<compile_context>
chip_gen: v7x
topology: tpu7x:2x2x1
jax: 0.10.0
libtpu: 0.0.40
codegen_flags: <defaults>
</compile_context>

<pallas_src>
import jax
import jax.numpy as jnp
import numpy as np
from jax import lax
from jax.experimental import pallas as pl
from jax.experimental.pallas import tpu as pltpu


def _pool_kernel(transform_ref,   # VMEM [bb, T, Lblk]
                 bertx_ref,       # VMEM [bb, Lblk, D]
                 anchor_ref,      # VMEM [bb, 1] int32
                 slen_ref,        # VMEM [bb, 1] int32
                 pooledL_ref,     # VMEM out [bb, D] f32
                 pooledR_ref,     # VMEM out [bb, D] f32
                 acc_ref):        # VMEM scratch [bb, T, D] f32
    li = pl.program_id(1)
    nl = pl.num_programs(1)

    # Partial transform_x for this L-block: [bb,T,Lblk] @ [bb,Lblk,D] -> [bb,T,D]
    # (batched MXU matmul; accumulate in f32 regardless of operand dtype).
    part = jnp.einsum('btl,bld->btd', transform_ref[...], bertx_ref[...],
                      preferred_element_type=jnp.float32)

    @pl.when(li == 0)
    def _():
        acc_ref[...] = part

    @pl.when(li > 0)
    def _():
        acc_ref[...] = acc_ref[...] + part

    # On the last L step: build block-wide masks once and pool over T.
    @pl.when(li == nl - 1)
    def _():
        bb, T, D = acc_ref.shape
        tx = acc_ref[...]                                          # [bb,T,D] f32
        t_idx = lax.broadcasted_iota(jnp.int32, (bb, T, D), 1)     # lane-dense
        anchor = jnp.reshape(anchor_ref[...], (bb, 1, 1))          # int32
        slen = jnp.reshape(slen_ref[...], (bb, 1, 1))
        maskL = t_idx <= anchor                     # t < anchor + 1
        maskR = (t_idx > anchor) & (t_idx < slen)
        # pooled = max(0, max over masked t of tx)  ==  PyTorch (+1 ... -1) trick.
        pooledL_ref[...] = jnp.max(jnp.where(maskL, tx, 0.0), axis=1)
        pooledR_ref[...] = jnp.max(jnp.where(maskR, tx, 0.0), axis=1)


def bertdm_noanchor_forward(transform, bert_x, anchor_index, sentence_length,
                            dense_w, dense_b, *, block_b=8, l_block=None):
    """transform: [B,T,L]; bert_x: [B,L,D]  (f32 or bf16-resident -- no cast here);
    anchor_index, sentence_length: [B] int; dense_w: [P, 2D] (nn.Linear layout);
    dense_b: [P].  l_block (multiple of 128 dividing L, or None) enables the
    'arbitrary' contraction grid axis for large L."""
    B, T, L = transform.shape
    _, _, D = bert_x.shape

    # Batch block: multiple of 8 (sublane constraint on the (bb, *) blocks).
    bb = max(8, (min(block_b, B) // 8) * 8)
    Bp = ((B + bb - 1) // bb) * bb
    if Bp != B:
        pad = Bp - B
        transform = jnp.pad(transform, ((0, pad), (0, 0), (0, 0)))
        bert_x = jnp.pad(bert_x, ((0, pad), (0, 0), (0, 0)))
        anchor_index = jnp.pad(anchor_index, (0, pad))
        sentence_length = jnp.pad(sentence_length, (0, pad))

    Lblk = L if l_block is None else int(l_block)
    assert L % Lblk == 0, "l_block must divide L"
    nl = L // Lblk

    anchor2d = anchor_index.astype(jnp.int32).reshape(Bp, 1)
    slen2d = sentence_length.astype(jnp.int32).reshape(Bp, 1)

    in_itemsize = jnp.dtype(bert_x.dtype).itemsize
    # VMEM budget: double-buffered inputs + outputs + f32 accumulator scratch.
    vmem_est = (2 * (bb * T * Lblk + bb * Lblk * D) * in_itemsize   # inputs
                + 2 * 2 * bb * 4                                    # anchors
                + 2 * 2 * bb * D * 4                                # outputs
                + bb * T * D * 4)                                   # acc scratch
    vmem_limit = int(min(64 << 20, max(2 * vmem_est + (2 << 20), 16 << 20)))

    cost = pl.CostEstimate(
        flops=2 * Bp * T * L * D,
        transcendentals=0,
        bytes_accessed=(Bp * (T * L + L * D) * in_itemsize
                        + 2 * Bp * D * 4 + 2 * Bp * 4))

    grid_spec = pltpu.PrefetchScalarGridSpec(
        num_scalar_prefetch=0,
        grid=(Bp // bb, nl),
        in_specs=[
            pl.BlockSpec((bb, T, Lblk), lambda bi, li: (bi, 0, li)),  # transform
            pl.BlockSpec((bb, Lblk, D), lambda bi, li: (bi, li, 0)),  # bert_x
            pl.BlockSpec((bb, 1), lambda bi, li: (bi, 0)),            # anchor
            pl.BlockSpec((bb, 1), lambda bi, li: (bi, 0)),            # slen
        ],
        out_specs=[
            pl.BlockSpec((bb, D), lambda bi, li: (bi, 0)),            # pooledL
            pl.BlockSpec((bb, D), lambda bi, li: (bi, 0)),            # pooledR
        ],
        scratch_shapes=[pltpu.VMEM((bb, T, D), jnp.float32)],
    )

    pooledL, pooledR = pl.pallas_call(
        _pool_kernel,
        out_shape=(jax.ShapeDtypeStruct((Bp, D), jnp.float32),
                   jax.ShapeDtypeStruct((Bp, D), jnp.float32)),
        grid_spec=grid_spec,
        compiler_params=pltpu.CompilerParams(
            dimension_semantics=("parallel", "arbitrary"),
            vmem_limit_bytes=vmem_limit),
        cost_estimate=cost,
    )(transform, bert_x, anchor2d, slen2d)

    pooledL = pooledL[:B]
    pooledR = pooledR[:B]

    # Final dense hoisted out of the kernel: one batched matmul over all B,
    # split as two partial dots so there is no feature-axis concatenate.
    w = dense_w.astype(jnp.float32)
    logits = (pooledL @ w[:, :D].T + pooledR @ w[:, D:].T
              + dense_b.astype(jnp.float32))
    return logits


def _reference(transform, bert_x, anchor_index, sentence_length, dense_w, dense_b):
    """Pure-JAX reference mirroring the PyTorch forward (incl. the +1/-1 trick)."""
    B, T, L = transform.shape
    tx = jnp.einsum('btl,bld->btd', transform.astype(jnp.float32),
                    bert_x.astype(jnp.float32))                  # [B,T,D]
    m = jnp.arange(T, dtype=jnp.int32)[None, :]                  # [1,T]
    maskL = (m < anchor_index[:, None] + 1).astype(jnp.float32)  # [B,T]
    maskR = ((m > anchor_index[:, None]) &
             (m < sentence_length[:, None])).astype(jnp.float32)
    Lv = tx * maskL[:, :, None] + 1.0
    Rv = tx * maskR[:, :, None] + 1.0
    pooledL = jnp.max(Lv, axis=1)
    pooledR = jnp.max(Rv, axis=1)
    x = jnp.concatenate([pooledL, pooledR], axis=1) - 1.0
    return x @ dense_w.astype(jnp.float32).T + dense_b.astype(jnp.float32)


if __name__ == "__main__":
    key = jax.random.PRNGKey(0)
    B, Lmax, T = 32, 16, 8
    n_layer, bert_dim, P = 2, 64, 3
    D = n_layer * bert_dim          # 128 -> lane-dense pooled outputs

    ks = jax.random.split(key, 9)
    # Synthetic last-n_layer BERT hidden states, concatenated on feature dim.
    bert_layers = [jax.random.normal(ks[i], (B, Lmax, bert_dim), jnp.float32)
                   for i in range(n_layer)]
    bert_x = jnp.concatenate(bert_layers, axis=-1)               # [B, L, D]
    transform = jax.random.normal(ks[2], (B, T, Lmax), jnp.float32)
    anchor_index = jax.random.randint(ks[3], (B,), 0, T, dtype=jnp.int32)
    sentence_length = jax.random.randint(ks[4], (B,), 1, T + 1, dtype=jnp.int32)
    dense_w = jax.random.normal(ks[5], (P, 2 * D), jnp.float32) * 0.02
    dense_b = jax.random.normal(ks[6], (P,), jnp.float32) * 0.02

    # f32-resident inputs (exact vs reference).
    ref = _reference(transform, bert_x, anchor_index, sentence_length,
                     dense_w, dense_b)
    logits = bertdm_noanchor_forward(transform, bert_x, anchor_index,
                                     sentence_length, dense_w, dense_b,
                                     block_b=8)
    jax.block_until_ready(logits)
    np.testing.assert_allclose(np.asarray(logits), np.asarray(ref),
                               rtol=1e-3, atol=1e-3)

    # bf16-resident inputs (no wrapper cast pass; valid on v5e/v6e/v7x).
    t_bf16 = transform.astype(jnp.bfloat16)
    x_bf16 = bert_x.astype(jnp.bfloat16)
    ref_bf16 = _reference(t_bf16, x_bf16, anchor_index, sentence_length,
                          dense_w, dense_b)
    logits_bf16 = bertdm_noanchor_forward(t_bf16, x_bf16, anchor_index,
                                          sentence_length, dense_w, dense_b,
                                          block_b=8)
    jax.block_until_ready(logits_bf16)
    np.testing.assert_allclose(np.asarray(logits_bf16), np.asarray(ref_bf16),
                               rtol=5e-2, atol=5e-2)

    # L-tiled path (exercises the 'arbitrary' contraction grid axis used for
    # production-size L so VMEM stays bounded while bb stays large).
    L2 = 256
    bert_x2 = jax.random.normal(ks[7], (B, L2, D), jnp.float32)
    transform2 = jax.random.normal(ks[8], (B, T, L2), jnp.float32) * 0.1
    ref2 = _reference(transform2, bert_x2, anchor_index, sentence_length,
                      dense_w, dense_b)
    logits2 = bertdm_noanchor_forward(transform2, bert_x2, anchor_index,
                                      sentence_length, dense_w, dense_b,
                                      block_b=8, l_block=128)
    jax.block_until_ready(logits2)
    np.testing.assert_allclose(np.asarray(logits2), np.asarray(ref2),
                               rtol=1e-3, atol=1e-3)

    print("KERNEL_OK")
</pallas_src>

<mosaic_0001>
module attributes {stable_mosaic.version = 11 : i64} {
  func.func @_pool_kernel(%arg0: i32, %arg1: i32, %arg2: memref<8x8x16xf32, #tpu.memory_space<vmem>>, %arg3: memref<8x16x128xf32, #tpu.memory_space<vmem>>, %arg4: memref<8x1xi32, #tpu.memory_space<vmem>>, %arg5: memref<8x1xi32, #tpu.memory_space<vmem>>, %arg6: memref<8x128xf32, #tpu.memory_space<vmem>>, %arg7: memref<8x128xf32, #tpu.memory_space<vmem>>, %arg8: memref<8x8x128xf32, #tpu.memory_space<vmem>>) attributes {dimension_semantics = [#tpu.dimension_semantics<parallel>, #tpu.dimension_semantics<arbitrary>], iteration_bounds = array<i64: 4, 1>, scalar_prefetch = 0 : i64, scratch_operands = 1 : i64, tpu.core_type = #tpu.core_type<tc>, window_params = [{transform_indices = @transform_0, window_bounds = array<i64: 8, 8, 16>}, {transform_indices = @transform_1, window_bounds = array<i64: 8, 16, 128>}, {transform_indices = @transform_2, window_bounds = array<i64: 8, 1>}, {transform_indices = @transform_3, window_bounds = array<i64: 8, 1>}, {transform_indices = @transform_4, window_bounds = array<i64: 8, 128>}, {transform_indices = @transform_5, window_bounds = array<i64: 8, 128>}]} {
    %c0 = arith.constant 0 : index
    %c0_0 = arith.constant 0 : index
    %c0_1 = arith.constant 0 : index
    %0 = vector.load %arg2[%c0, %c0_0, %c0_1] : memref<8x8x16xf32, #tpu.memory_space<vmem>>, vector<8x8x16xf32>
    %c0_2 = arith.constant 0 : index
    %c0_3 = arith.constant 0 : index
    %c0_4 = arith.constant 0 : index
    %1 = vector.load %arg3[%c0_2, %c0_3, %c0_4] : memref<8x16x128xf32, #tpu.memory_space<vmem>>, vector<8x16x128xf32>
    "tpu.trace_start"() <{level = 10 : i32, message = "btl,bld->btd"}> : () -> ()
    %cst = arith.constant dense<0.000000e+00> : vector<8x8x128xf32>
    %2 = tpu.matmul %0, %1, %cst {dimension_numbers = #tpu.dot_dimension_numbers<[2], [1], [1], [2], [0, 0, 0, 1, 1, 2], [0], [0]>} : vector<8x8x16xf32>, vector<8x16x128xf32>, vector<8x8x128xf32> -> vector<8x8x128xf32>
    %c0_i32 = arith.constant 0 : i32
    "tpu.trace_stop"() : () -> ()
    %3 = arith.cmpi eq, %arg1, %c0_i32 : i32
    %4 = arith.extui %3 : i1 to i32
    %c0_i32_5 = arith.constant 0 : i32
    %5 = arith.cmpi ne, %4, %c0_i32_5 : i32
    scf.if %5 {
      %c0_10 = arith.constant 0 : index
      %c0_11 = arith.constant 0 : index
      %c0_12 = arith.constant 0 : index
      %12 = vector.load %arg8[%c0_10, %c0_11, %c0_12] : memref<8x8x128xf32, #tpu.memory_space<vmem>>, vector<8x8x128xf32>
      tpu.vector_store %arg8[%c0_10, %c0_11, %c0_12], %2 {strides = array<i32>} : memref<8x8x128xf32, #tpu.memory_space<vmem>>, vector<8x8x128xf32>,
    } else {
    }
    %c0_i32_6 = arith.constant 0 : i32
    %6 = arith.cmpi sgt, %arg1, %c0_i32_6 : i32
    %7 = arith.extui %6 : i1 to i32
    %c0_i32_7 = arith.constant 0 : i32
    %8 = arith.cmpi ne, %7, %c0_i32_7 : i32
    scf.if %8 {
      %c0_10 = arith.constant 0 : index
      %c0_11 = arith.constant 0 : index
      %c0_12 = arith.constant 0 : index
      %12 = vector.load %arg8[%c0_10, %c0_11, %c0_12] : memref<8x8x128xf32, #tpu.memory_space<vmem>>, vector<8x8x128xf32>
      %13 = arith.addf %12, %2 : vector<8x8x128xf32>
      %c0_13 = arith.constant 0 : index
      %c0_14 = arith.constant 0 : index
      %c0_15 = arith.constant 0 : index
      %14 = vector.load %arg8[%c0_13, %c0_14, %c0_15] : memref<8x8x128xf32, #tpu.memory_space<vmem>>, vector<8x8x128xf32>
      tpu.vector_store %arg8[%c0_13, %c0_14, %c0_15], %13 {strides = array<i32>} : memref<8x8x128xf32, #tpu.memory_space<vmem>>, vector<8x8x128xf32>,
    } else {
    }
    %c0_i32_8 = arith.constant 0 : i32
    %9 = arith.cmpi eq, %arg1, %c0_i32_8 : i32
    %10 = arith.extui %9 : i1 to i32
    %c0_i32_9 = arith.constant 0 : i32
    %11 = arith.cmpi ne, %10, %c0_i32_9 : i32
    scf.if %11 {
      %c0_10 = arith.constant 0 : index
      %c0_11 = arith.constant 0 : index
      %c0_12 = arith.constant 0 : index
      %12 = vector.load %arg8[%c0_10, %c0_11, %c0_12] : memref<8x8x128xf32, #tpu.memory_space<vmem>>, vector<8x8x128xf32>
      %13 = tpu.iota {dimensions = array<i32: 1>} : vector<8x8x128xi32>
      %c0_13 = arith.constant 0 : index
      %c0_14 = arith.constant 0 : index
      %14 = vector.load %arg4[%c0_13, %c0_14] : memref<8x1xi32, #tpu.memory_space<vmem>>, vector<8x1xi32>
      %15 = vector.shape_cast %14 : vector<8x1xi32> to vector<8x1x1xi32>
      %c0_15 = arith.constant 0 : index
      %c0_16 = arith.constant 0 : index
      %16 = vector.load %arg5[%c0_15, %c0_16] : memref<8x1xi32, #tpu.memory_space<vmem>>, vector<8x1xi32>
      %17 = vector.shape_cast %16 : vector<8x1xi32> to vector<8x1x1xi32>
      %18 = vector.broadcast %15 : vector<8x1x1xi32> to vector<8x8x128xi32>
      %19 = arith.cmpi sle, %13, %18 : vector<8x8x128xi32>
      %20 = vector.broadcast %15 : vector<8x1x1xi32> to vector<8x8x128xi32>
      %21 = arith.cmpi sgt, %13, %20 : vector<8x8x128xi32>
      %22 = vector.broadcast %17 : vector<8x1x1xi32> to vector<8x8x128xi32>
      %23 = arith.cmpi slt, %13, %22 : vector<8x8x128xi32>
      %24 = arith.andi %21, %23 : vector<8x8x128xi1>
      %cst_17 = arith.constant 0.000000e+00 : f32
      %25 = vector.broadcast %cst_17 : f32 to vector<8x8x128xf32>
      %26 = arith.select %19, %12, %25 : vector<8x8x128xi1>, vector<8x8x128xf32>
      %cst_18 = arith.constant dense<0xFF800000> : vector<8x128xf32>
      %27 = vector.multi_reduction <maximumf>, %26, %cst_18 [1] : vector<8x8x128xf32> to vector<8x128xf32>
      %c0_19 = arith.constant 0 : index
      %c0_20 = arith.constant 0 : index
      %28 = vector.load %arg6[%c0_19, %c0_20] : memref<8x128xf32, #tpu.memory_space<vmem>>, vector<8x128xf32>
      tpu.vector_store %arg6[%c0_19, %c0_20], %27 {strides = array<i32>} : memref<8x128xf32, #tpu.memory_space<vmem>>, vector<8x128xf32>,
      %cst_21 = arith.constant 0.000000e+00 : f32
      %29 = vector.broadcast %cst_21 : f32 to vector<8x8x128xf32>
      %30 = arith.select %24, %12, %29 : vector<8x8x128xi1>, vector<8x8x128xf32>
      %cst_22 = arith.constant dense<0xFF800000> : vector<8x128xf32>
      %31 = vector.multi_reduction <maximumf>, %30, %cst_22 [1] : vector<8x8x128xf32> to vector<8x128xf32>
      %c0_23 = arith.constant 0 : index
      %c0_24 = arith.constant 0 : index
      %32 = vector.load %arg7[%c0_23, %c0_24] : memref<8x128xf32, #tpu.memory_space<vmem>>, vector<8x128xf32>
      tpu.vector_store %arg7[%c0_23, %c0_24], %31 {strides = array<i32>} : memref<8x128xf32, #tpu.memory_space<vmem>>, vector<8x128xf32>,
    } else {
    }
    return
  }
  func.func @transform_0(%arg0: i32, %arg1: i32) -> (i32, i32, i32) {
    %c0_i32 = arith.constant 0 : i32
    %c0_i32_0 = arith.constant 0 : i32
    return %arg0, %c0_i32, %arg1 : i32, i32, i32
  }
  func.func @transform_1(%arg0: i32, %arg1: i32) -> (i32, i32, i32) {
    %c0_i32 = arith.constant 0 : i32
    %c0_i32_0 = arith.constant 0 : i32
    return %arg0, %arg1, %c0_i32 : i32, i32, i32
  }
  func.func @transform_2(%arg0: i32, %arg1: i32) -> (i32, i32) {
    %c0_i32 = arith.constant 0 : i32
    %c0_i32_0 = arith.constant 0 : i32
    return %arg0, %c0_i32 : i32, i32
  }
  func.func @transform_3(%arg0: i32, %arg1: i32) -> (i32, i32) {
    %c0_i32 = arith.constant 0 : i32
    %c0_i32_0 = arith.constant 0 : i32
    return %arg0, %c0_i32 : i32, i32
  }
  func.func @transform_4(%arg0: i32, %arg1: i32) -> (i32, i32) {
    %c0_i32 = arith.constant 0 : i32
    %c0_i32_0 = arith.constant 0 : i32
    return %arg0, %c0_i32 : i32, i32
  }
  func.func @transform_5(%arg0: i32, %arg1: i32) -> (i32, i32) {
    %c0_i32 = arith.constant 0 : i32
    %c0_i32_0 = arith.constant 0 : i32
    return %arg0, %c0_i32 : i32, i32
  }
}

</mosaic_0001>

<llo_original>
// kernel: tpu_custom_call.1
$region0: #{tpu_custom_call.1}
  #allocation0 [shape = 'u32[]', space=smem, size = 0x4, offset = 0x4, fixed_abs, tag = 'smem constant byte address 0x4 - core index']
  #allocation1 [shape = 'u32[144,128]{1,0:T(1,128)}', space=vmem, size = 0x12000, scoped, tag = 'internal scratch']
  #allocation2 [shape = 'f32[8,8,128]{2,1,0:T(8,128)}', space=vmem, size = 0x8000, scoped, tag = 'scratch operand']
  %s0 = inlined_call_operand.vmem [shape: f32[32,8,16], index: 0, kind: input, shape index: {}]
  %s1 = inlined_call_operand.hbm [shape: f32[32,16,128], index: 1, kind: input, shape index: {}]
  %s2 = inlined_call_operand.vmem [shape: s32[32,1], index: 2, kind: input, shape index: {}]
  %s3 = inlined_call_operand.vmem [shape: s32[32,1], index: 3, kind: input, shape index: {}]
  %s4 = inlined_call_operand.hbm [shape: f32[32,128], index: 4, kind: output, shape index: {0}]
  %s5 = inlined_call_operand.hbm [shape: f32[32,128], index: 5, kind: output, shape index: {1}]
  %6 = xla_tuple %s4, %s5
  %s7 = sld [smem:[#allocation0]]
  $region73: #{tpu_custom_call.1} parent=0
    _
  %s9 = ssub.s32 1, %s7
  %s10 = scalar_select 0, %s9, %s7
  $region1: #{tpu_custom_call.1} parent=0
    #allocation3 [shape = 'u8[131072]{0}', space=vmem, size = 0x20000, scoped, tag = 'input window, operand 1']
    #allocation4 [shape = 's32[2]{0}', space=sflag, size = 0x8, scoped, tag = 'scoped memory for tpu_custom_call.1']
    #allocation5 [shape = 's32[2]{0}', space=sflag, size = 0x8, scoped, tag = 'scoped memory for tpu_custom_call.1']
    #allocation6 [shape = 'u8[8192]{0}', space=vmem, size = 0x2000, scoped, tag = 'output window, operand 0']
    #allocation7 [shape = 'u8[8192]{0}', space=vmem, size = 0x2000, scoped, tag = 'output window, operand 1']
    #allocation8 [shape = 's32[2]{0}', space=sflag, size = 0x8, scoped, tag = 'scoped memory for tpu_custom_call.1']
    %11 = vsyncpa [#allocation4], 0
    %s12 = scalar_lea.sflag [#allocation4], 1
    %13 = vsyncpa %s12, 0
    %14 = vsyncpa [#allocation5], 0
    %s15 = scalar_lea.sflag [#allocation5], 1
    %16 = vsyncpa %s15, 0
    %17 = vsyncpa [#allocation8], 0
    %s18 = scalar_lea.sflag [#allocation8], 1
    %19 = vsyncpa %s18, 0
    loop: start=0, step=1, limit=6
    $region2: #{tpu_custom_call.1} parent=1 // loop_pre_header
      _
    $region3: #{tpu_custom_call.1} parent=1 // loop_header
      %s21 = sphi 0, %s25
      %p22 = scmp.ge.s32.totalorder %s21, 6
      %s28 = sphi 0, %s40
      %s29 = sphi 0, %s36
      %s30 = sphi 0, %s28
      %s31 = sphi 0, %s29
      %s32 = sphi 0, %s30
      %s33 = sphi 0, %s31
      %s45 = sphi 0, %s47
      %s48 = sphi 0, %s45
      %s49 = sphi 0, %s48
      %s65 = sphi 0, %s49
      %s73 = sphi 0, %s75
      %s76 = sphi 0, %s73
      %s77 = sphi 0, %s76
      %s93 = sphi 0, %s77
      %s99 = sphi 0, %s101
      %s102 = sphi 0, %s99
      %s103 = sphi 0, %s102
      %s119 = sphi 0, %s103
      %s125 = sphi 0, %s127
      %s128 = sphi 0, %s125
      %s129 = sphi 0, %s128
      %s145 = sphi 0, %s129
      %s151 = sphi 0, %s153
      %s154 = sphi 0, %s151
      %s155 = sphi 0, %s154
      %s171 = sphi 0, %s155
      %s177 = sphi 0, %s179
      %s180 = sphi 0, %s177
      %s181 = sphi 0, %s180
      %s197 = sphi 0, %s181
    $region4: #{tpu_custom_call.1} parent=1 // loop_header_branch
      %24 = sbr.rel (%p22) target = $region8
    $region5: #{tpu_custom_call.1} parent=1 // loop_body
      %s26 = ssub.s32 %s21, 1
      %s27 = ssub.s32 %s21, 2
      %s34 = sadd.s32 1, %s29
      %p35 = scmp.ge.s32.totalorder %s34, 1
      %s36 = scalar_select %p35, 0, %s34
      %s37 = sadd.s32 1, %s28
      %s38 = scalar_select %p35, %s37, %s28
      %p39 = scmp.ge.s32.totalorder %s38, 4
      %s40 = scalar_select %p39, 0, %s38
      %s41 = ssub.s32 %s28, %s40
      %s42 = ssub.s32 %s29, %s36
      %s43 = sor.u32 %s41, %s42
      %p44 = scmp.eq.s32.totalorder %s43, 0
      %s46 = sadd.s32 %s45, 1
      %s47 = scalar_select %p44, %s45, %s46
      %p50 = pneg %p44
      %p51 = scmp.eq.s32.totalorder %s21, 3
      %p52 = por %p50, %p51
      %p53 = scmp.ne.s32.totalorder %s45, %s48
      %p54 = scmp.eq.s32.totalorder %s21, 0
      %p55 = por %p53, %p54
      %p56 = scmp.ne.s32.totalorder %s45, %s48
      %p57 = scmp.eq.s32.totalorder %s26, 3
      %p58 = por %p56, %p57
      %p59 = scmp.ne.s32.totalorder %s48, %s49
      %p60 = scmp.eq.s32.totalorder %s26, 0
      %p61 = por %p59, %p60
      %p62 = scmp.ne.s32.totalorder %s48, %s49
      %p63 = scmp.eq.s32.totalorder %s27, 3
      %p64 = por %p62, %p63
      %p66 = scmp.ne.s32.totalorder %s49, %s65
      %p67 = scmp.eq.s32.totalorder %s27, 0
      %p68 = por %p66, %p67
      %s69 = ssub.s32 %s28, %s40
      %s70 = ssub.s32 %s29, %s36
      %s71 = sor.u32 %s69, %s70
      %p72 = scmp.eq.s32.totalorder %s71, 0
      %s74 = sadd.s32 %s73, 1
      %s75 = scalar_select %p72, %s73, %s74
      %p78 = pneg %p72
      %p79 = scmp.eq.s32.totalorder %s21, 3
      %p80 = por %p78, %p79
      %p81 = scmp.ne.s32.totalorder %s73, %s76
      %p82 = scmp.eq.s32.totalorder %s21, 0
      %p83 = por %p81, %p82
      %p84 = scmp.ne.s32.totalorder %s73, %s76
      %p85 = scmp.eq.s32.totalorder %s26, 3
      %p86 = por %p84, %p85
      %p87 = scmp.ne.s32.totalorder %s76, %s77
      %p88 = scmp.eq.s32.totalorder %s26, 0
      %p89 = por %p87, %p88
      %p90 = scmp.ne.s32.totalorder %s76, %s77
      %p91 = scmp.eq.s32.totalorder %s27, 3
      %p92 = por %p90, %p91
      %p94 = scmp.ne.s32.totalorder %s77, %s93
      %p95 = scmp.eq.s32.totalorder %s27, 0
      %p96 = por %p94, %p95
      %s97 = ssub.s32 %s28, %s40
      %p98 = scmp.eq.s32.totalorder %s97, 0
      %s100 = sadd.s32 %s99, 1
      %s101 = scalar_select %p98, %s99, %s100
      %p104 = pneg %p98
      %p105 = scmp.eq.s32.totalorder %s21, 3
      %p106 = por %p104, %p105
      %p107 = scmp.ne.s32.totalorder %s99, %s102
      %p108 = scmp.eq.s32.totalorder %s21, 0
      %p109 = por %p107, %p108
      %p110 = scmp.ne.s32.totalorder %s99, %s102
      %p111 = scmp.eq.s32.totalorder %s26, 3
      %p112 = por %p110, %p111
      %p113 = scmp.ne.s32.totalorder %s102, %s103
      %p114 = scmp.eq.s32.totalorder %s26, 0
      %p115 = por %p113, %p114
      %p116 = scmp.ne.s32.totalorder %s102, %s103
      %p117 = scmp.eq.s32.totalorder %s27, 3
      %p118 = por %p116, %p117
      %p120 = scmp.ne.s32.totalorder %s103, %s119
      %p121 = scmp.eq.s32.totalorder %s27, 0
      %p122 = por %p120, %p121
      %s123 = ssub.s32 %s28, %s40
      %p124 = scmp.eq.s32.totalorder %s123, 0
      %s126 = sadd.s32 %s125, 1
      %s127 = scalar_select %p124, %s125, %s126
      %p130 = pneg %p124
      %p131 = scmp.eq.s32.totalorder %s21, 3
      %p132 = por %p130, %p131
      %p133 = scmp.ne.s32.totalorder %s125, %s128
      %p134 = scmp.eq.s32.totalorder %s21, 0
      %p135 = por %p133, %p134
      %p136 = scmp.ne.s32.totalorder %s125, %s128
      %p137 = scmp.eq.s32.totalorder %s26, 3
      %p138 = por %p136, %p137
      %p139 = scmp.ne.s32.totalorder %s128, %s129
      %p140 = scmp.eq.s32.totalorder %s26, 0
      %p141 = por %p139, %p140
      %p142 = scmp.ne.s32.totalorder %s128, %s129
      %p143 = scmp.eq.s32.totalorder %s27, 3
      %p144 = por %p142, %p143
      %p146 = scmp.ne.s32.totalorder %s129, %s145
      %p147 = scmp.eq.s32.totalorder %s27, 0
      %p148 = por %p146, %p147
      %s149 = ssub.s32 %s28, %s40
      %p150 = scmp.eq.s32.totalorder %s149, 0
      %s152 = sadd.s32 %s151, 1
      %s153 = scalar_select %p150, %s151, %s152
      %p156 = pneg %p150
      %p157 = scmp.eq.s32.totalorder %s21, 3
      %p158 = por %p156, %p157
      %p159 = scmp.ne.s32.totalorder %s151, %s154
      %p160 = scmp.eq.s32.totalorder %s21, 0
      %p161 = por %p159, %p160
      %p162 = scmp.ne.s32.totalorder %s151, %s154
      %p163 = scmp.eq.s32.totalorder %s26, 3
      %p164 = por %p162, %p163
      %p165 = scmp.ne.s32.totalorder %s154, %s155
      %p166 = scmp.eq.s32.totalorder %s26, 0
      %p167 = por %p165, %p166
      %p168 = scmp.ne.s32.totalorder %s154, %s155
      %p169 = scmp.eq.s32.totalorder %s27, 3
      %p170 = por %p168, %p169
      %p172 = scmp.ne.s32.totalorder %s155, %s171
      %p173 = scmp.eq.s32.totalorder %s27, 0
      %p174 = por %p172, %p173
      %s175 = ssub.s32 %s28, %s40
      %p176 = scmp.eq.s32.totalorder %s175, 0
      %s178 = sadd.s32 %s177, 1
      %s179 = scalar_select %p176, %s177, %s178
      %p182 = pneg %p176
      %p183 = scmp.eq.s32.totalorder %s21, 3
      %p184 = por %p182, %p183
      %p185 = scmp.ne.s32.totalorder %s177, %s180
      %p186 = scmp.eq.s32.totalorder %s21, 0
      %p187 = por %p185, %p186
      %p188 = scmp.ne.s32.totalorder %s177, %s180
      %p189 = scmp.eq.s32.totalorder %s26, 3
      %p190 = por %p188, %p189
      %p191 = scmp.ne.s32.totalorder %s180, %s181
      %p192 = scmp.eq.s32.totalorder %s26, 0
      %p193 = por %p191, %p192
      %p194 = scmp.ne.s32.totalorder %s180, %s181
      %p195 = scmp.eq.s32.totalorder %s27, 3
      %p196 = por %p194, %p195
      %p198 = scmp.ne.s32.totalorder %s181, %s197
      %p199 = scmp.eq.s32.totalorder %s27, 0
      %p200 = por %p198, %p199
      %p201 = scmp.le.s32.totalorder 1, %s21
      %p202 = scmp.lt.s32.totalorder %s21, 5
      %p203 = pnand %p201, %p202
      %p204 = pneg %p203
      // Predicated region
      $region9: #{tpu_custom_call.1} parent=5 // pred_check
        _
      $region10: #{tpu_custom_call.1} parent=5 // pred_check_branch
        %206 = sbr.rel (%p203) target = $region12
      $region11: #{tpu_custom_call.1} parent=5 // pred_region
        %s207 = ssub.s32 %s21, 1
      $region12: #{tpu_custom_call.1} parent=5 // pred_fallthru
        _
      %p208 = scmp.lt.s32.totalorder %s21, 4
      // Predicated region
      $region13: #{tpu_custom_call.1} parent=5 // pred_check
        %p209 = pneg %p208
      $region14: #{tpu_custom_call.1} parent=5 // pred_check_branch
        %211 = sbr.rel (%p209) target = $region16
      $region15: #{tpu_custom_call.1} parent=5 // pred_region
        // Predicated region
        $region17: #{tpu_custom_call.1} parent=15 // pred_check
          %p212 = pneg %p55
        $region18: #{tpu_custom_call.1} parent=15 // pred_check_branch
          %214 = sbr.rel (%p212) target = $region20
        $region19: #{tpu_custom_call.1} parent=15 // pred_region
          %s215 = smul.u32 8, %s28
          %p216 = scmp.lt.s32.totalorder %s215, 31
          %s217 = scalar_select %p216, %s215, 31
          %p218 = scmp.lt.s32.totalorder %s29, 0
          %s219 = scalar_select %p218, %s29, 0
          %s220 = sadd.s32 %s219, %s217
          %s221 = smul.addr %s220, 8
          %s222 = scalar_lea.vmem %s0, %s221
          %s223 = smul.u32 8, %s28
        $region20: #{tpu_custom_call.1} parent=15 // pred_fallthru
          _
        // Predicated region
        $region21: #{tpu_custom_call.1} parent=15 // pred_check
          %p224 = pneg %p83
        $region22: #{tpu_custom_call.1} parent=15 // pred_check_branch
          %226 = sbr.rel (%p224) target = $region24
        $region23: #{tpu_custom_call.1} parent=15 // pred_region
          %s227 = sand.u32 %s73, 1
          %s228 = scalar_lea.sflag [#allocation4], %s227
          %s229 = sand.u32 %s73, 1
          %s230 = smul.addr %s229, 128
          %s231 = scalar_lea.vmem [#allocation3], %s230
          %s232 = smul.u32 8, %s28
          %s233 = smul.u32 2, %s29
          %s235 = ssub.s32 2048, 2048
          %236 = vsyncadd %s228, %s235
          %s237 = smul.addr %s232, 2
          %s238 = sadd.s32 %s233, %s237
          %s239 = smul.addr %s238, 128
          %s240 = scalar_lea.hbm %s1, %s239
          %s241 = sshll.u32 %s231, 4
          %s242 = int_to_ptr.vmem [resolvable:$true] %s241
          %247 = dma.hbm_to_vmem [thread:$0]  %s240, 2048, %s242, %s228, 128, 128, 8
        $region24: #{tpu_custom_call.1} parent=15 // pred_fallthru
          _
        // Predicated region
        $region25: #{tpu_custom_call.1} parent=15 // pred_check
          %p248 = pneg %p109
        $region26: #{tpu_custom_call.1} parent=15 // pred_check_branch
          %250 = sbr.rel (%p248) target = $region28
        $region27: #{tpu_custom_call.1} parent=15 // pred_region
          %p251 = scmp.lt.s32.totalorder %s28, 3
          %s252 = scalar_select %p251, %s28, 3
          %s253 = smul.addr %s252, 8
          %s254 = scalar_lea.vmem %s2, %s253
        $region28: #{tpu_custom_call.1} parent=15 // pred_fallthru
          _
        // Predicated region
        $region29: #{tpu_custom_call.1} parent=15 // pred_check
          %p255 = pneg %p135
        $region30: #{tpu_custom_call.1} parent=15 // pred_check_branch
          %257 = sbr.rel (%p255) target = $region32
        $region31: #{tpu_custom_call.1} parent=15 // pred_region
          %p258 = scmp.lt.s32.totalorder %s28, 3
          %s259 = scalar_select %p258, %s28, 3
          %s260 = smul.addr %s259, 8
          %s261 = scalar_lea.vmem %s3, %s260
        $region32: #{tpu_custom_call.1} parent=15 // pred_fallthru
          _
      $region16: #{tpu_custom_call.1} parent=5 // pred_fallthru
        _
      %p262 = scmp.le.s32.totalorder 1, %s21
      %p263 = scmp.lt.s32.totalorder %s21, 5
      %p264 = pnand %p262, %p263
      %p265 = pneg %p264
      // Predicated region
      $region33: #{tpu_custom_call.1} parent=5 // pred_check
        _
      $region34: #{tpu_custom_call.1} parent=5 // pred_check_branch
        %267 = sbr.rel (%p264) target = $region36
      $region35: #{tpu_custom_call.1} parent=5 // pred_region
        %s268 = ssub.s32 %s21, 1
        %s269 = sand.u32 %s76, 1
        %s270 = scalar_lea.sflag [#allocation4], %s269
        %s271 = sand.u32 %s76, 1
        %s272 = smul.addr %s271, 128
        %s273 = scalar_lea.vmem [#allocation3], %s272
        // Predicated region
        $region37: #{tpu_custom_call.1} parent=35 // pred_check
          %p274 = pneg %p89
        $region38: #{tpu_custom_call.1} parent=35 // pred_check_branch
          %276 = sbr.rel (%p274) target = $region40
        $region39: #{tpu_custom_call.1} parent=35 // pred_region
          %277 = dma.done %s270, 2048
        $region40: #{tpu_custom_call.1} parent=35 // pred_fallthru
          _
        %s278 = smul.u32 8, %s30
        %p279 = scmp.lt.s32.totalorder %s278, 31
        %s280 = scalar_select %p279, %s278, 31
        %p281 = scmp.lt.s32.totalorder %s31, 0
        %s282 = scalar_select %p281, %s31, 0
        %s283 = sadd.s32 %s282, %s280
        %s284 = smul.addr %s283, 8
        %s285 = scalar_lea.vmem %s0, %s284
        %p286 = pneg %p61
        %p287 = pneg %p58
        %s288 = sand.u32 %s76, 1
        %s289 = scalar_lea.sflag [#allocation4], %s288
        %s290 = sand.u32 %s76, 1
        %s291 = smul.addr %s290, 128
        %s292 = scalar_lea.vmem [#allocation3], %s291
        %p293 = pneg %p89
        %p294 = pneg %p86
        %p295 = scmp.lt.s32.totalorder %s30, 3
        %s296 = scalar_select %p295, %s30, 3
        %s297 = smul.addr %s296, 8
        %s298 = scalar_lea.vmem %s2, %s297
        %p299 = pneg %p115
        %p300 = pneg %p112
        %p301 = scmp.lt.s32.totalorder %s30, 3
        %s302 = scalar_select %p301, %s30, 3
        %s303 = smul.addr %s302, 8
        %s304 = scalar_lea.vmem %s3, %s303
        %p305 = pneg %p141
        %p306 = pneg %p138
        %p307 = pneg %p167
        %p308 = pneg %p164
        %s309 = sand.u32 %s154, 1
        %s310 = scalar_lea.sflag [#allocation5], %s309
        %s311 = sand.u32 %s154, 1
        %s312 = smul.addr %s311, 8
        %s313 = scalar_lea.vmem [#allocation6], %s312
        %p314 = pneg %p193
        %p315 = pneg %p190
        %s316 = sand.u32 %s180, 1
        %s317 = scalar_lea.sflag [#allocation8], %s316
        %s318 = sand.u32 %s180, 1
        %s319 = smul.addr %s318, 8
        %s320 = scalar_lea.vmem [#allocation7], %s319
        %s321 = smul.u32 8, %s30
        %p322 = scmp.lt.s32.totalorder %s321, 31
        %s323 = scalar_select %p322, %s321, 31
        %p324 = scmp.lt.s32.totalorder %s31, 0
        %s325 = scalar_select %p324, %s31, 0
        %s326 = sadd.s32 %s325, %s323
        %s327 = smul.addr %s326, 8
        %s328 = scalar_lea.vmem %s0, %s327
        %s329 = smul.u32 8, %s30
        %s330 = smul.u32 8, %s30
        %s331 = smul.u32 2, %s31
        %p332 = scmp.lt.s32.totalorder %s30, 3
        %s333 = scalar_select %p332, %s30, 3
        %s334 = smul.addr %s333, 8
        %s335 = scalar_lea.vmem %s2, %s334
        %p336 = scmp.lt.s32.totalorder %s30, 3
        %s337 = scalar_select %p336, %s30, 3
        %s338 = smul.addr %s337, 8
        %s339 = scalar_lea.vmem %s3, %s338
        %v340 = vld [vmem:[%s328] sm:$0xff]
        %v341 = vld [vmem:[%s328 + $0x8] sm:$0xff]
        %v342 = vld [vmem:[%s328 + $0x10] sm:$0xff]
        %v343 = vld [vmem:[%s328 + $0x18] sm:$0xff]
        %v344 = vld [vmem:[%s328 + $0x20] sm:$0xff]
        %v345 = vld [vmem:[%s328 + $0x28] sm:$0xff]
        %v346 = vld [vmem:[%s328 + $0x30] sm:$0xff]
        %v347 = vld [vmem:[%s328 + $0x38] sm:$0xff]
        %v348 = vld [vmem:[%s273] sm:$0xff]
        %v349 = vld [vmem:[%s273 + $0x8] sm:$0xff]
        %v350 = vld [vmem:[%s273 + $0x10] sm:$0xff]
        %v351 = vld [vmem:[%s273 + $0x18] sm:$0xff]
        %v352 = vld [vmem:[%s273 + $0x20] sm:$0xff]
        %v353 = vld [vmem:[%s273 + $0x28] sm:$0xff]
        %v354 = vld [vmem:[%s273 + $0x30] sm:$0xff]
        %v355 = vld [vmem:[%s273 + $0x38] sm:$0xff]
        %v356 = vld [vmem:[%s273 + $0x40] sm:$0xff]
        %v357 = vld [vmem:[%s273 + $0x48] sm:$0xff]
        %v358 = vld [vmem:[%s273 + $0x50] sm:$0xff]
        %v359 = vld [vmem:[%s273 + $0x58] sm:$0xff]
        %v360 = vld [vmem:[%s273 + $0x60] sm:$0xff]
        %v361 = vld [vmem:[%s273 + $0x68] sm:$0xff]
        %v362 = vld [vmem:[%s273 + $0x70] sm:$0xff]
        %v363 = vld [vmem:[%s273 + $0x78] sm:$0xff]
        %vm364 = vcmask 130048
        %v366 = vsel %vm364, %v340, 0
        %368 = vmatprep.subr.mxu0 0.0
        %369 = vmatpush1.msra.mxu0 %v348
        %370 = vmatprep.subr.mxu0 0.0
        %371 = vmatpush1.msra.mxu0 %v349
        %372 = vmatprep.subr.mxu0 0.0
        %373 = vmatpush1.msra.mxu0 0.0
        %374 = vmatprep.subr.mxu0 0.0
        %375 = vmatpush1.msra.mxu0 0.0
        %376 = vmatprep.subr.mxu0 0.0
        %377 = vmatpush1.msra.mxu0 0.0
        %378 = vmatprep.subr.mxu0 0.0
        %379 = vmatpush1.msra.mxu0 0.0
        %380 = vmatprep.subr.mxu0 0.0
        %381 = vmatpush1.msra.mxu0 0.0
        %382 = vmatprep.subr.mxu0 0.0
        %383 = vmatpush1.msra.mxu0 0.0
        %384 = vmatprep.subr.mxu0 0.0
        %385 = vmatpush1.msra.mxu0 0.0
        %386 = vmatprep.subr.mxu0 0.0
        %387 = vmatpush1.msra.mxu0 0.0
        %388 = vmatprep.subr.mxu0 0.0
        %389 = vmatpush1.msra.mxu0 0.0
        %390 = vmatprep.subr.mxu0 0.0
        %391 = vmatpush1.msra.mxu0 0.0
        %392 = vmatprep.subr.mxu0 0.0
        %393 = vmatpush1.msra.mxu0 0.0
        %394 = vmatprep.subr.mxu0 0.0
        %395 = vmatpush1.msra.mxu0 0.0
        %396 = vmatprep.subr.mxu0 0.0
        %397 = vmatpush1.msra.mxu0 0.0
        %398 = vmatprep.subr.mxu0 0.0
        %399 = vmatpush1.msra.mxu0 0.0
        %400 = vmatprep.subr.mxu0 0.0
        %401 = vmatpush1.msra.mxu0 0.0
        %402 = vmatprep.subr.mxu0 0.0
        %403 = vmatpush1.msra.mxu0 0.0
        %404 = vmatprep.subr.mxu0 0.0
        %405 = vmatpush1.msra.mxu0 0.0
        %406 = vmatprep.subr.mxu0 0.0
        %407 = vmatpush1.msra.mxu0 0.0
        %408 = vmatprep.subr.mxu0 0.0
        %409 = vmatpush1.msra.mxu0 0.0
        %410 = vmatprep.subr.mxu0 0.0
        %411 = vmatpush1.msra.mxu0 0.0
        %412 = vmatprep.subr.mxu0 0.0
        %413 = vmatpush1.msra.mxu0 0.0
        %414 = vmatprep.subr.mxu0 0.0
        %415 = vmatpush1.msra.mxu0 0.0
        %416 = vmatprep.subr.mxu0 0.0
        %417 = vmatpush1.msra.mxu0 0.0
        %418 = vmatprep.subr.mxu0 0.0
        %419 = vmatpush1.msra.mxu0 0.0
        %420 = vmatprep.subr.mxu0 0.0
        %421 = vmatpush1.msra.mxu0 0.0
        %422 = vmatprep.subr.mxu0 0.0
        %423 = vmatpush1.msra.mxu0 0.0
        %424 = vmatprep.subr.mxu0 0.0
        %425 = vmatpush1.msra.mxu0 0.0
        %426 = vmatprep.subr.mxu0 0.0
        %427 = vmatpush1.msra.mxu0 0.0
        %428 = vmatprep.subr.mxu0 0.0
        %429 = vmatpush1.msra.mxu0 0.0
        %430 = vmatprep.subr.mxu0 0.0
        %431 = vmatpush1.msra.mxu0 0.0
        %432 = vmatprep.mubr.f32.mxu0 0.0
        %433 = vmatmul.mubr.f32.gmra.mrb[0].mxu0 %v366
        %v434 = vpop.f32.mrb[0].mxu0
        %v435 = vadd.f32 0.0, %v434
        %v436 = vpop.f32.mrb[0].mxu0
        %437 = vdwg.mxu0
        %v439 = vsel %vm364, %v341, 0
        %441 = vmatprep.subr.mxu0 0.0
        %442 = vmatpush1.msra.mxu0 %v350
        %443 = vmatprep.subr.mxu0 0.0
        %444 = vmatpush1.msra.mxu0 %v351
        %445 = vmatprep.subr.mxu0 0.0
        %446 = vmatpush1.msra.mxu0 0.0
        %447 = vmatprep.subr.mxu0 0.0
        %448 = vmatpush1.msra.mxu0 0.0
        %449 = vmatprep.subr.mxu0 0.0
        %450 = vmatpush1.msra.mxu0 0.0
        %451 = vmatprep.subr.mxu0 0.0
        %452 = vmatpush1.msra.mxu0 0.0
        %453 = vmatprep.subr.mxu0 0.0
        %454 = vmatpush1.msra.mxu0 0.0
        %455 = vmatprep.subr.mxu0 0.0
        %456 = vmatpush1.msra.mxu0 0.0
        %457 = vmatprep.subr.mxu0 0.0
        %458 = vmatpush1.msra.mxu0 0.0
        %459 = vmatprep.subr.mxu0 0.0
        %460 = vmatpush1.msra.mxu0 0.0
        %461 = vmatprep.subr.mxu0 0.0
        %462 = vmatpush1.msra.mxu0 0.0
        %463 = vmatprep.subr.mxu0 0.0
        %464 = vmatpush1.msra.mxu0 0.0
        %465 = vmatprep.subr.mxu0 0.0
        %466 = vmatpush1.msra.mxu0 0.0
        %467 = vmatprep.subr.mxu0 0.0
        %468 = vmatpush1.msra.mxu0 0.0
        %469 = vmatprep.subr.mxu0 0.0
        %470 = vmatpush1.msra.mxu0 0.0
        %471 = vmatprep.subr.mxu0 0.0
        %472 = vmatpush1.msra.mxu0 0.0
        %473 = vmatprep.subr.mxu0 0.0
        %474 = vmatpush1.msra.mxu0 0.0
        %475 = vmatprep.subr.mxu0 0.0
        %476 = vmatpush1.msra.mxu0 0.0
        %477 = vmatprep.subr.mxu0 0.0
        %478 = vmatpush1.msra.mxu0 0.0
        %479 = vmatprep.subr.mxu0 0.0
        %480 = vmatpush1.msra.mxu0 0.0
        %481 = vmatprep.subr.mxu0 0.0
        %482 = vmatpush1.msra.mxu0 0.0
        %483 = vmatprep.subr.mxu0 0.0
        %484 = vmatpush1.msra.mxu0 0.0
        %485 = vmatprep.subr.mxu0 0.0
        %486 = vmatpush1.msra.mxu0 0.0
        %487 = vmatprep.subr.mxu0 0.0
        %488 = vmatpush1.msra.mxu0 0.0
        %489 = vmatprep.subr.mxu0 0.0
        %490 = vmatpush1.msra.mxu0 0.0
        %491 = vmatprep.subr.mxu0 0.0
        %492 = vmatpush1.msra.mxu0 0.0
        %493 = vmatprep.subr.mxu0 0.0
        %494 = vmatpush1.msra.mxu0 0.0
        %495 = vmatprep.subr.mxu0 0.0
        %496 = vmatpush1.msra.mxu0 0.0
        %497 = vmatprep.subr.mxu0 0.0
        %498 = vmatpush1.msra.mxu0 0.0
        %499 = vmatprep.subr.mxu0 0.0
        %500 = vmatpush1.msra.mxu0 0.0
        %501 = vmatprep.subr.mxu0 0.0
        %502 = vmatpush1.msra.mxu0 0.0
        %503 = vmatprep.subr.mxu0 0.0
        %504 = vmatpush1.msra.mxu0 0.0
        %505 = vmatprep.mubr.f32.mxu0 0.0
        %506 = vmatmul.mubr.f32.gmra.mrb[0].mxu0 %v439
        %v507 = vpop.f32.mrb[0].mxu0
        %v508 = vadd.f32 0.0, %v507
        %v509 = vpop.f32.mrb[0].mxu0
        %510 = vdwg.mxu0
        %v512 = vsel %vm364, %v342, 0
        %514 = vmatprep.subr.mxu0 0.0
        %515 = vmatpush1.msra.mxu0 %v352
        %516 = vmatprep.subr.mxu0 0.0
        %517 = vmatpush1.msra.mxu0 %v353
        %518 = vmatprep.subr.mxu0 0.0
        %519 = vmatpush1.msra.mxu0 0.0
        %520 = vmatprep.subr.mxu0 0.0
        %521 = vmatpush1.msra.mxu0 0.0
        %522 = vmatprep.subr.mxu0 0.0
        %523 = vmatpush1.msra.mxu0 0.0
        %524 = vmatprep.subr.mxu0 0.0
        %525 = vmatpush1.msra.mxu0 0.0
        %526 = vmatprep.subr.mxu0 0.0
        %527 = vmatpush1.msra.mxu0 0.0
        %528 = vmatprep.subr.mxu0 0.0
        %529 = vmatpush1.msra.mxu0 0.0
        %530 = vmatprep.subr.mxu0 0.0
        %531 = vmatpush1.msra.mxu0 0.0
        %532 = vmatprep.subr.mxu0 0.0
        %533 = vmatpush1.msra.mxu0 0.0
        %534 = vmatprep.subr.mxu0 0.0
        %535 = vmatpush1.msra.mxu0 0.0
        %536 = vmatprep.subr.mxu0 0.0
        %537 = vmatpush1.msra.mxu0 0.0
        %538 = vmatprep.subr.mxu0 0.0
        %539 = vmatpush1.msra.mxu0 0.0
        %540 = vmatprep.subr.mxu0 0.0
        %541 = vmatpush1.msra.mxu0 0.0
        %542 = vmatprep.subr.mxu0 0.0
        %543 = vmatpush1.msra.mxu0 0.0
        %544 = vmatprep.subr.mxu0 0.0
        %545 = vmatpush1.msra.mxu0 0.0
        %546 = vmatprep.subr.mxu0 0.0
        %547 = vmatpush1.msra.mxu0 0.0
        %548 = vmatprep.subr.mxu0 0.0
        %549 = vmatpush1.msra.mxu0 0.0
        %550 = vmatprep.subr.mxu0 0.0
        %551 = vmatpush1.msra.mxu0 0.0
        %552 = vmatprep.subr.mxu0 0.0
        %553 = vmatpush1.msra.mxu0 0.0
        %554 = vmatprep.subr.mxu0 0.0
        %555 = vmatpush1.msra.mxu0 0.0
        %556 = vmatprep.subr.mxu0 0.0
        %557 = vmatpush1.msra.mxu0 0.0
        %558 = vmatprep.subr.mxu0 0.0
        %559 = vmatpush1.msra.mxu0 0.0
        %560 = vmatprep.subr.mxu0 0.0
        %561 = vmatpush1.msra.mxu0 0.0
        %562 = vmatprep.subr.mxu0 0.0
        %563 = vmatpush1.msra.mxu0 0.0
        %564 = vmatprep.subr.mxu0 0.0
        %565 = vmatpush1.msra.mxu0 0.0
        %566 = vmatprep.subr.mxu0 0.0
        %567 = vmatpush1.msra.mxu0 0.0
        %568 = vmatprep.subr.mxu0 0.0
        %569 = vmatpush1.msra.mxu0 0.0
        %570 = vmatprep.subr.mxu0 0.0
        %571 = vmatpush1.msra.mxu0 0.0
        %572 = vmatprep.subr.mxu0 0.0
        %573 = vmatpush1.msra.mxu0 0.0
        %574 = vmatprep.subr.mxu0 0.0
        %575 = vmatpush1.msra.mxu0 0.0
        %576 = vmatprep.subr.mxu0 0.0
        %577 = vmatpush1.msra.mxu0 0.0
        %578 = vmatprep.mubr.f32.mxu0 0.0
        %579 = vmatmul.mubr.f32.gmra.mrb[0].mxu0 %v512
        %v580 = vpop.f32.mrb[0].mxu0
        %v581 = vadd.f32 0.0, %v580
        %v582 = vpop.f32.mrb[0].mxu0
        %583 = vdwg.mxu0
        %v585 = vsel %vm364, %v343, 0
        %587 = vmatprep.subr.mxu0 0.0
        %588 = vmatpush1.msra.mxu0 %v354
        %589 = vmatprep.subr.mxu0 0.0
        %590 = vmatpush1.msra.mxu0 %v355
        %591 = vmatprep.subr.mxu0 0.0
        %592 = vmatpush1.msra.mxu0 0.0
        %593 = vmatprep.subr.mxu0 0.0
        %594 = vmatpush1.msra.mxu0 0.0
        %595 = vmatprep.subr.mxu0 0.0
        %596 = vmatpush1.msra.mxu0 0.0
        %597 = vmatprep.subr.mxu0 0.0
        %598 = vmatpush1.msra.mxu0 0.0
        %599 = vmatprep.subr.mxu0 0.0
        %600 = vmatpush1.msra.mxu0 0.0
        %601 = vmatprep.subr.mxu0 0.0
        %602 = vmatpush1.msra.mxu0 0.0
        %603 = vmatprep.subr.mxu0 0.0
        %604 = vmatpush1.msra.mxu0 0.0
        %605 = vmatprep.subr.mxu0 0.0
        %606 = vmatpush1.msra.mxu0 0.0
        %607 = vmatprep.subr.mxu0 0.0
        %608 = vmatpush1.msra.mxu0 0.0
        %609 = vmatprep.subr.mxu0 0.0
        %610 = vmatpush1.msra.mxu0 0.0
        %611 = vmatprep.subr.mxu0 0.0
        %612 = vmatpush1.msra.mxu0 0.0
        %613 = vmatprep.subr.mxu0 0.0
        %614 = vmatpush1.msra.mxu0 0.0
        %615 = vmatprep.subr.mxu0 0.0
        %616 = vmatpush1.msra.mxu0 0.0
        %617 = vmatprep.subr.mxu0 0.0
        %618 = vmatpush1.msra.mxu0 0.0
        %619 = vmatprep.subr.mxu0 0.0
        %620 = vmatpush1.msra.mxu0 0.0
        %621 = vmatprep.subr.mxu0 0.0
        %622 = vmatpush1.msra.mxu0 0.0
        %623 = vmatprep.subr.mxu0 0.0
        %624 = vmatpush1.msra.mxu0 0.0
        %625 = vmatprep.subr.mxu0 0.0
        %626 = vmatpush1.msra.mxu0 0.0
        %627 = vmatprep.subr.mxu0 0.0
        %628 = vmatpush1.msra.mxu0 0.0
        %629 = vmatprep.subr.mxu0 0.0
        %630 = vmatpush1.msra.mxu0 0.0
        %631 = vmatprep.subr.mxu0 0.0
        %632 = vmatpush1.msra.mxu0 0.0
        %633 = vmatprep.subr.mxu0 0.0
        %634 = vmatpush1.msra.mxu0 0.0
        %635 = vmatprep.subr.mxu0 0.0
        %636 = vmatpush1.msra.mxu0 0.0
        %637 = vmatprep.subr.mxu0 0.0
        %638 = vmatpush1.msra.mxu0 0.0
        %639 = vmatprep.subr.mxu0 0.0
        %640 = vmatpush1.msra.mxu0 0.0
        %641 = vmatprep.subr.mxu0 0.0
        %642 = vmatpush1.msra.mxu0 0.0
        %643 = vmatprep.subr.mxu0 0.0
        %644 = vmatpush1.msra.mxu0 0.0
        %645 = vmatprep.subr.mxu0 0.0
        %646 = vmatpush1.msra.mxu0 0.0
        %647 = vmatprep.subr.mxu0 0.0
        %648 = vmatpush1.msra.mxu0 0.0
        %649 = vmatprep.subr.mxu0 0.0
        %650 = vmatpush1.msra.mxu0 0.0
        %651 = vmatprep.mubr.f32.mxu0 0.0
        %652 = vmatmul.mubr.f32.gmra.mrb[0].mxu0 %v585
        %v653 = vpop.f32.mrb[0].mxu0
        %v654 = vadd.f32 0.0, %v653
        %v655 = vpop.f32.mrb[0].mxu0
        %656 = vdwg.mxu0
        %v658 = vsel %vm364, %v344, 0
        %660 = vmatprep.subr.mxu0 0.0
        %661 = vmatpush1.msra.mxu0 %v356
        %662 = vmatprep.subr.mxu0 0.0
        %663 = vmatpush1.msra.mxu0 %v357
        %664 = vmatprep.subr.mxu0 0.0
        %665 = vmatpush1.msra.mxu0 0.0
        %666 = vmatprep.subr.mxu0 0.0
        %667 = vmatpush1.msra.mxu0 0.0
        %668 = vmatprep.subr.mxu0 0.0
        %669 = vmatpush1.msra.mxu0 0.0
        %670 = vmatprep.subr.mxu0 0.0
        %671 = vmatpush1.msra.mxu0 0.0
        %672 = vmatprep.subr.mxu0 0.0
        %673 = vmatpush1.msra.mxu0 0.0
        %674 = vmatprep.subr.mxu0 0.0
        %675 = vmatpush1.msra.mxu0 0.0
        %676 = vmatprep.subr.mxu0 0.0
        %677 = vmatpush1.msra.mxu0 0.0
        %678 = vmatprep.subr.mxu0 0.0
        %679 = vmatpush1.msra.mxu0 0.0
        %680 = vmatprep.subr.mxu0 0.0
        %681 = vmatpush1.msra.mxu0 0.0
        %682 = vmatprep.subr.mxu0 0.0
        %683 = vmatpush1.msra.mxu0 0.0
        %684 = vmatprep.subr.mxu0 0.0
        %685 = vmatpush1.msra.mxu0 0.0
        %686 = vmatprep.subr.mxu0 0.0
        %687 = vmatpush1.msra.mxu0 0.0
        %688 = vmatprep.subr.mxu0 0.0
        %689 = vmatpush1.msra.mxu0 0.0
        %690 = vmatprep.subr.mxu0 0.0
        %691 = vmatpush1.msra.mxu0 0.0
        %692 = vmatprep.subr.mxu0 0.0
        %693 = vmatpush1.msra.mxu0 0.0
        %694 = vmatprep.subr.mxu0 0.0
        %695 = vmatpush1.msra.mxu0 0.0
        %696 = vmatprep.subr.mxu0 0.0
        %697 = vmatpush1.msra.mxu0 0.0
        %698 = vmatprep.subr.mxu0 0.0
        %699 = vmatpush1.msra.mxu0 0.0
        %700 = vmatprep.subr.mxu0 0.0
        %701 = vmatpush1.msra.mxu0 0.0
        %702 = vmatprep.subr.mxu0 0.0
        %703 = vmatpush1.msra.mxu0 0.0
        %704 = vmatprep.subr.mxu0 0.0
        %705 = vmatpush1.msra.mxu0 0.0
        %706 = vmatprep.subr.mxu0 0.0
        %707 = vmatpush1.msra.mxu0 0.0
        %708 = vmatprep.subr.mxu0 0.0
        %709 = vmatpush1.msra.mxu0 0.0
        %710 = vmatprep.subr.mxu0 0.0
        %711 = vmatpush1.msra.mxu0 0.0
        %712 = vmatprep.subr.mxu0 0.0
        %713 = vmatpush1.msra.mxu0 0.0
        %714 = vmatprep.subr.mxu0 0.0
        %715 = vmatpush1.msra.mxu0 0.0
        %716 = vmatprep.subr.mxu0 0.0
        %717 = vmatpush1.msra.mxu0 0.0
        %718 = vmatprep.subr.mxu0 0.0
        %719 = vmatpush1.msra.mxu0 0.0
        %720 = vmatprep.subr.mxu0 0.0
        %721 = vmatpush1.msra.mxu0 0.0
        %722 = vmatprep.subr.mxu0 0.0
        %723 = vmatpush1.msra.mxu0 0.0
        %724 = vmatprep.mubr.f32.mxu0 0.0
        %725 = vmatmul.mubr.f32.gmra.mrb[0].mxu0 %v658
        %v726 = vpop.f32.mrb[0].mxu0
        %v727 = vadd.f32 0.0, %v726
        %v728 = vpop.f32.mrb[0].mxu0
        %729 = vdwg.mxu0
        %v731 = vsel %vm364, %v345, 0
        %733 = vmatprep.subr.mxu0 0.0
        %734 = vmatpush1.msra.mxu0 %v358
        %735 = vmatprep.subr.mxu0 0.0
        %736 = vmatpush1.msra.mxu0 %v359
        %737 = vmatprep.subr.mxu0 0.0
        %738 = vmatpush1.msra.mxu0 0.0
        %739 = vmatprep.subr.mxu0 0.0
        %740 = vmatpush1.msra.mxu0 0.0
        %741 = vmatprep.subr.mxu0 0.0
        %742 = vmatpush1.msra.mxu0 0.0
        %743 = vmatprep.subr.mxu0 0.0
        %744 = vmatpush1.msra.mxu0 0.0
        %745 = vmatprep.subr.mxu0 0.0
        %746 = vmatpush1.msra.mxu0 0.0
        %747 = vmatprep.subr.mxu0 0.0
        %748 = vmatpush1.msra.mxu0 0.0
        %749 = vmatprep.subr.mxu0 0.0
        %750 = vmatpush1.msra.mxu0 0.0
        %751 = vmatprep.subr.mxu0 0.0
        %752 = vmatpush1.msra.mxu0 0.0
        %753 = vmatprep.subr.mxu0 0.0
        %754 = vmatpush1.msra.mxu0 0.0
        %755 = vmatprep.subr.mxu0 0.0
        %756 = vmatpush1.msra.mxu0 0.0
        %757 = vmatprep.subr.mxu0 0.0
        %758 = vmatpush1.msra.mxu0 0.0
        %759 = vmatprep.subr.mxu0 0.0
        %760 = vmatpush1.msra.mxu0 0.0
        %761 = vmatprep.subr.mxu0 0.0
        %762 = vmatpush1.msra.mxu0 0.0
        %763 = vmatprep.subr.mxu0 0.0
        %764 = vmatpush1.msra.mxu0 0.0
        %765 = vmatprep.subr.mxu0 0.0
        %766 = vmatpush1.msra.mxu0 0.0
        %767 = vmatprep.subr.mxu0 0.0
        %768 = vmatpush1.msra.mxu0 0.0
        %769 = vmatprep.subr.mxu0 0.0
        %770 = vmatpush1.msra.mxu0 0.0
        %771 = vmatprep.subr.mxu0 0.0
        %772 = vmatpush1.msra.mxu0 0.0
        %773 = vmatprep.subr.mxu0 0.0
        %774 = vmatpush1.msra.mxu0 0.0
        %775 = vmatprep.subr.mxu0 0.0
        %776 = vmatpush1.msra.mxu0 0.0
        %777 = vmatprep.subr.mxu0 0.0
        %778 = vmatpush1.msra.mxu0 0.0
        %779 = vmatprep.subr.mxu0 0.0
        %780 = vmatpush1.msra.mxu0 0.0
        %781 = vmatprep.subr.mxu0 0.0
        %782 = vmatpush1.msra.mxu0 0.0
        %783 = vmatprep.subr.mxu0 0.0
        %784 = vmatpush1.msra.mxu0 0.0
        %785 = vmatprep.subr.mxu0 0.0
        %786 = vmatpush1.msra.mxu0 0.0
        %787 = vmatprep.subr.mxu0 0.0
        %788 = vmatpush1.msra.mxu0 0.0
        %789 = vmatprep.subr.mxu0 0.0
        %790 = vmatpush1.msra.mxu0 0.0
        %791 = vmatprep.subr.mxu0 0.0
        %792 = vmatpush1.msra.mxu0 0.0
        %793 = vmatprep.subr.mxu0 0.0
        %794 = vmatpush1.msra.mxu0 0.0
        %795 = vmatprep.subr.mxu0 0.0
        %796 = vmatpush1.msra.mxu0 0.0
        %797 = vmatprep.mubr.f32.mxu0 0.0
        %798 = vmatmul.mubr.f32.gmra.mrb[0].mxu0 %v731
        %v799 = vpop.f32.mrb[0].mxu0
        %v800 = vadd.f32 0.0, %v799
        %v801 = vpop.f32.mrb[0].mxu0
        %802 = vdwg.mxu0
        %v804 = vsel %vm364, %v346, 0
        %806 = vmatprep.subr.mxu0 0.0
        %807 = vmatpush1.msra.mxu0 %v360
        %808 = vmatprep.subr.mxu0 0.0
        %809 = vmatpush1.msra.mxu0 %v361
        %810 = vmatprep.subr.mxu0 0.0
        %811 = vmatpush1.msra.mxu0 0.0
        %812 = vmatprep.subr.mxu0 0.0
        %813 = vmatpush1.msra.mxu0 0.0
        %814 = vmatprep.subr.mxu0 0.0
        %815 = vmatpush1.msra.mxu0 0.0
        %816 = vmatprep.subr.mxu0 0.0
        %817 = vmatpush1.msra.mxu0 0.0
        %818 = vmatprep.subr.mxu0 0.0
        %819 = vmatpush1.msra.mxu0 0.0
        %820 = vmatprep.subr.mxu0 0.0
        %821 = vmatpush1.msra.mxu0 0.0
        %822 = vmatprep.subr.mxu0 0.0
        %823 = vmatpush1.msra.mxu0 0.0
        %824 = vmatprep.subr.mxu0 0.0
        %825 = vmatpush1.msra.mxu0 0.0
        %826 = vmatprep.subr.mxu0 0.0
        %827 = vmatpush1.msra.mxu0 0.0
        %828 = vmatprep.subr.mxu0 0.0
        %829 = vmatpush1.msra.mxu0 0.0
        %830 = vmatprep.subr.mxu0 0.0
        %831 = vmatpush1.msra.mxu0 0.0
        %832 = vmatprep.subr.mxu0 0.0
        %833 = vmatpush1.msra.mxu0 0.0
        %834 = vmatprep.subr.mxu0 0.0
        %835 = vmatpush1.msra.mxu0 0.0
        %836 = vmatprep.subr.mxu0 0.0
        %837 = vmatpush1.msra.mxu0 0.0
        %838 = vmatprep.subr.mxu0 0.0
        %839 = vmatpush1.msra.mxu0 0.0
        %840 = vmatprep.subr.mxu0 0.0
        %841 = vmatpush1.msra.mxu0 0.0
        %842 = vmatprep.subr.mxu0 0.0
        %843 = vmatpush1.msra.mxu0 0.0
        %844 = vmatprep.subr.mxu0 0.0
        %845 = vmatpush1.msra.mxu0 0.0
        %846 = vmatprep.subr.mxu0 0.0
        %847 = vmatpush1.msra.mxu0 0.0
        %848 = vmatprep.subr.mxu0 0.0
        %849 = vmatpush1.msra.mxu0 0.0
        %850 = vmatprep.subr.mxu0 0.0
        %851 = vmatpush1.msra.mxu0 0.0
        %852 = vmatprep.subr.mxu0 0.0
        %853 = vmatpush1.msra.mxu0 0.0
        %854 = vmatprep.subr.mxu0 0.0
        %855 = vmatpush1.msra.mxu0 0.0
        %856 = vmatprep.subr.mxu0 0.0
        %857 = vmatpush1.msra.mxu0 0.0
        %858 = vmatprep.subr.mxu0 0.0
        %859 = vmatpush1.msra.mxu0 0.0
        %860 = vmatprep.subr.mxu0 0.0
        %861 = vmatpush1.msra.mxu0 0.0
        %862 = vmatprep.subr.mxu0 0.0
        %863 = vmatpush1.msra.mxu0 0.0
        %864 = vmatprep.subr.mxu0 0.0
        %865 = vmatpush1.msra.mxu0 0.0
        %866 = vmatprep.subr.mxu0 0.0
        %867 = vmatpush1.msra.mxu0 0.0
        %868 = vmatprep.subr.mxu0 0.0
        %869 = vmatpush1.msra.mxu0 0.0
        %870 = vmatprep.mubr.f32.mxu0 0.0
        %871 = vmatmul.mubr.f32.gmra.mrb[0].mxu0 %v804
        %v872 = vpop.f32.mrb[0].mxu0
        %v873 = vadd.f32 0.0, %v872
        %v874 = vpop.f32.mrb[0].mxu0
        %875 = vdwg.mxu0
        %v877 = vsel %vm364, %v347, 0
        %879 = vmatprep.subr.mxu0 0.0
        %880 = vmatpush1.msra.mxu0 %v362
        %881 = vmatprep.subr.mxu0 0.0
        %882 = vmatpush1.msra.mxu0 %v363
        %883 = vmatprep.subr.mxu0 0.0
        %884 = vmatpush1.msra.mxu0 0.0
        %885 = vmatprep.subr.mxu0 0.0
        %886 = vmatpush1.msra.mxu0 0.0
        %887 = vmatprep.subr.mxu0 0.0
        %888 = vmatpush1.msra.mxu0 0.0
        %889 = vmatprep.subr.mxu0 0.0
        %890 = vmatpush1.msra.mxu0 0.0
        %891 = vmatprep.subr.mxu0 0.0
        %892 = vmatpush1.msra.mxu0 0.0
        %893 = vmatprep.subr.mxu0 0.0
        %894 = vmatpush1.msra.mxu0 0.0
        %895 = vmatprep.subr.mxu0 0.0
        %896 = vmatpush1.msra.mxu0 0.0
        %897 = vmatprep.subr.mxu0 0.0
        %898 = vmatpush1.msra.mxu0 0.0
        %899 = vmatprep.subr.mxu0 0.0
        %900 = vmatpush1.msra.mxu0 0.0
        %901 = vmatprep.subr.mxu0 0.0
        %902 = vmatpush1.msra.mxu0 0.0
        %903 = vmatprep.subr.mxu0 0.0
        %904 = vmatpush1.msra.mxu0 0.0
        %905 = vmatprep.subr.mxu0 0.0
        %906 = vmatpush1.msra.mxu0 0.0
        %907 = vmatprep.subr.mxu0 0.0
        %908 = vmatpush1.msra.mxu0 0.0
        %909 = vmatprep.subr.mxu0 0.0
        %910 = vmatpush1.msra.mxu0 0.0
        %911 = vmatprep.subr.mxu0 0.0
        %912 = vmatpush1.msra.mxu0 0.0
        %913 = vmatprep.subr.mxu0 0.0
        %914 = vmatpush1.msra.mxu0 0.0
        %915 = vmatprep.subr.mxu0 0.0
        %916 = vmatpush1.msra.mxu0 0.0
        %917 = vmatprep.subr.mxu0 0.0
        %918 = vmatpush1.msra.mxu0 0.0
        %919 = vmatprep.subr.mxu0 0.0
        %920 = vmatpush1.msra.mxu0 0.0
        %921 = vmatprep.subr.mxu0 0.0
        %922 = vmatpush1.msra.mxu0 0.0
        %923 = vmatprep.subr.mxu0 0.0
        %924 = vmatpush1.msra.mxu0 0.0
        %925 = vmatprep.subr.mxu0 0.0
        %926 = vmatpush1.msra.mxu0 0.0
        %927 = vmatprep.subr.mxu0 0.0
        %928 = vmatpush1.msra.mxu0 0.0
        %929 = vmatprep.subr.mxu0 0.0
        %930 = vmatpush1.msra.mxu0 0.0
        %931 = vmatprep.subr.mxu0 0.0
        %932 = vmatpush1.msra.mxu0 0.0
        %933 = vmatprep.subr.mxu0 0.0
        %934 = vmatpush1.msra.mxu0 0.0
        %935 = vmatprep.subr.mxu0 0.0
        %936 = vmatpush1.msra.mxu0 0.0
        %937 = vmatprep.subr.mxu0 0.0
        %938 = vmatpush1.msra.mxu0 0.0
        %939 = vmatprep.subr.mxu0 0.0
        %940 = vmatpush1.msra.mxu0 0.0
        %941 = vmatprep.subr.mxu0 0.0
        %942 = vmatpush1.msra.mxu0 0.0
        %943 = vmatprep.mubr.f32.mxu0 0.0
        %944 = vmatmul.mubr.f32.gmra.mrb[0].mxu0 %v877
        %v945 = vpop.f32.mrb[0].mxu0
        %v946 = vadd.f32 0.0, %v945
        %v947 = vpop.f32.mrb[0].mxu0
        %948 = vdwg.mxu0
        %p949 = scmp.eq.s32.totalorder %s31, 0
        // Predicated region
        $region41: #{tpu_custom_call.1} parent=35 // pred_check
          %p950 = pneg %p949
        $region42: #{tpu_custom_call.1} parent=35 // pred_check_branch
          %952 = sbr.rel (%p950) target = $region44
        $region43: #{tpu_custom_call.1} parent=35 // pred_region
          %953 = vst [vmem:[#allocation2] sm:$0xff] %v435
          %954 = vst [vmem:[#allocation2 + $0x8] sm:$0xff] %v508
          %955 = vst [vmem:[#allocation2 + $0x10] sm:$0xff] %v581
          %956 = vst [vmem:[#allocation2 + $0x18] sm:$0xff] %v654
          %957 = vst [vmem:[#allocation2 + $0x20] sm:$0xff] %v727
          %958 = vst [vmem:[#allocation2 + $0x28] sm:$0xff] %v800
          %959 = vst [vmem:[#allocation2 + $0x30] sm:$0xff] %v873
          %960 = vst [vmem:[#allocation2 + $0x38] sm:$0xff] %v946
        $region44: #{tpu_custom_call.1} parent=35 // pred_fallthru
          _
        %p961 = scmp.gt.s32.totalorder %s31, 0
        // Predicated region
        $region45: #{tpu_custom_call.1} parent=35 // pred_check
          %p962 = pneg %p961
        $region46: #{tpu_custom_call.1} parent=35 // pred_check_branch
          %964 = sbr.rel (%p962) target = $region48
        $region47: #{tpu_custom_call.1} parent=35 // pred_region
          %v965 = vld [vmem:[#allocation2] sm:$0xff]
          %v966 = vld [vmem:[#allocation2 + $0x8] sm:$0xff]
          %v967 = vld [vmem:[#allocation2 + $0x10] sm:$0xff]
          %v968 = vld [vmem:[#allocation2 + $0x18] sm:$0xff]
          %v969 = vld [vmem:[#allocation2 + $0x20] sm:$0xff]
          %v970 = vld [vmem:[#allocation2 + $0x28] sm:$0xff]
          %v971 = vld [vmem:[#allocation2 + $0x30] sm:$0xff]
          %v972 = vld [vmem:[#allocation2 + $0x38] sm:$0xff]
          %v973 = vadd.f32 %v965, %v435
          %v974 = vadd.f32 %v966, %v508
          %v975 = vadd.f32 %v967, %v581
          %v976 = vadd.f32 %v968, %v654
          %v977 = vadd.f32 %v969, %v727
          %v978 = vadd.f32 %v970, %v800
          %v979 = vadd.f32 %v971, %v873
          %v980 = vadd.f32 %v972, %v946
          %981 = vst [vmem:[#allocation2] sm:$0xff] %v973
          %982 = vst [vmem:[#allocation2 + $0x8] sm:$0xff] %v974
          %983 = vst [vmem:[#allocation2 + $0x10] sm:$0xff] %v975
          %984 = vst [vmem:[#allocation2 + $0x18] sm:$0xff] %v976
          %985 = vst [vmem:[#allocation2 + $0x20] sm:$0xff] %v977
          %986 = vst [vmem:[#allocation2 + $0x28] sm:$0xff] %v978
          %987 = vst [vmem:[#allocation2 + $0x30] sm:$0xff] %v979
          %988 = vst [vmem:[#allocation2 + $0x38] sm:$0xff] %v980
        $region48: #{tpu_custom_call.1} parent=35 // pred_fallthru
          _
        // Predicated region
        $region49: #{tpu_custom_call.1} parent=35 // pred_check
          %p989 = pneg %p949
        $region50: #{tpu_custom_call.1} parent=35 // pred_check_branch
          %991 = sbr.rel (%p989) target = $region52
        $region51: #{tpu_custom_call.1} parent=35 // pred_region
          %v992 = vld [vmem:[#allocation2] sm:$0xff]
          %v993 = vld [vmem:[#allocation2 + $0x8] sm:$0xff]
          %v994 = vld [vmem:[#allocation2 + $0x10] sm:$0xff]
          %v995 = vld [vmem:[#allocation2 + $0x18] sm:$0xff]
          %v996 = vld [vmem:[#allocation2 + $0x20] sm:$0xff]
          %v997 = vld [vmem:[#allocation2 + $0x28] sm:$0xff]
          %v998 = vld [vmem:[#allocation2 + $0x30] sm:$0xff]
          %v999 = vld [vmem:[#allocation2 + $0x38] sm:$0xff]
          %v1000 = vlaneseq
          %v1001 = vshrl.u32 %v1000, 7
          %v1002 = vld [vmem:[%s335] sm:$0xff]
          %v1003 = vcombine.high %v1002, %v1002
          %v1005 = vunpack.c.l.s4 1966171168
          %v1006 = vunpack.c.0.s8 %v1005
          %v1007 = vlaneseq
          %v1008 = vshrl.u32 %v1007, 7
          %v1009 = vsub.s32 %v1006, %v1008
          %v1010 = vrot.slane %v1002, %v1009
          %v1012 = vunpack.c.l.s4 1966171168
          %v1013 = vunpack.c.0.s8 %v1012
          %v1014 = vlaneseq
          %v1015 = vshrl.u32 %v1014, 7
          %v1016 = vsub.s32 %v1013, %v1015
          %v1017 = vrot.slane %v1003, %v1016
          %v1018 = vcombine.high %v1010, %v1010
          %v1019 = vcombine.high %v1017, %v1017
          %v1021 = vunpack.c.l.s4 1966171168
          %v1022 = vunpack.c.0.s8 %v1021
          %v1023 = vlaneseq
          %v1024 = vshrl.u32 %v1023, 7
          %v1025 = vsub.s32 %v1022, %v1024
          %v1026 = vrot.slane %v1010, %v1025
          %v1028 = vunpack.c.l.s4 1966171168
          %v1029 = vunpack.c.0.s8 %v1028
          %v1030 = vlaneseq
          %v1031 = vshrl.u32 %v1030, 7
          %v1032 = vsub.s32 %v1029, %v1031
          %v1033 = vrot.slane %v1017, %v1032
          %v1035 = vunpack.c.l.s4 1966171168
          %v1036 = vunpack.c.0.s8 %v1035
          %v1037 = vlaneseq
          %v1038 = vshrl.u32 %v1037, 7
          %v1039 = vsub.s32 %v1036, %v1038
          %v1040 = vrot.slane %v1018, %v1039
          %v1042 = vunpack.c.l.s4 1966171168
          %v1043 = vunpack.c.0.s8 %v1042
          %v1044 = vlaneseq
          %v1045 = vshrl.u32 %v1044, 7
          %v1046 = vsub.s32 %v1043, %v1045
          %v1047 = vrot.slane %v1019, %v1046
          %v1048 = vcombine.high %v1026, %v1026
          %v1049 = vcombine.high %v1033, %v1033
          %v1050 = vcombine.high %v1040, %v1040
          %v1051 = vcombine.high %v1047, %v1047
          %v1052 = vld [vmem:[%s339] sm:$0xff]
          %v1053 = vcombine.high %v1052, %v1052
          %v1055 = vunpack.c.l.s4 1966171168
          %v1056 = vunpack.c.0.s8 %v1055
          %v1057 = vlaneseq
          %v1058 = vshrl.u32 %v1057, 7
          %v1059 = vsub.s32 %v1056, %v1058
          %v1060 = vrot.slane %v1052, %v1059
          %v1062 = vunpack.c.l.s4 1966171168
          %v1063 = vunpack.c.0.s8 %v1062
          %v1064 = vlaneseq
          %v1065 = vshrl.u32 %v1064, 7
          %v1066 = vsub.s32 %v1063, %v1065
          %v1067 = vrot.slane %v1053, %v1066
          %v1068 = vcombine.high %v1060, %v1060
          %v1069 = vcombine.high %v1067, %v1067
          %v1071 = vunpack.c.l.s4 1966171168
          %v1072 = vunpack.c.0.s8 %v1071
          %v1073 = vlaneseq
          %v1074 = vshrl.u32 %v1073, 7
          %v1075 = vsub.s32 %v1072, %v1074
          %v1076 = vrot.slane %v1060, %v1075
          %v1078 = vunpack.c.l.s4 1966171168
          %v1079 = vunpack.c.0.s8 %v1078
          %v1080 = vlaneseq
          %v1081 = vshrl.u32 %v1080, 7
          %v1082 = vsub.s32 %v1079, %v1081
          %v1083 = vrot.slane %v1067, %v1082
          %v1085 = vunpack.c.l.s4 1966171168
          %v1086 = vunpack.c.0.s8 %v1085
          %v1087 = vlaneseq
          %v1088 = vshrl.u32 %v1087, 7
          %v1089 = vsub.s32 %v1086, %v1088
          %v1090 = vrot.slane %v1068, %v1089
          %v1092 = vunpack.c.l.s4 1966171168
          %v1093 = vunpack.c.0.s8 %v1092
          %v1094 = vlaneseq
          %v1095 = vshrl.u32 %v1094, 7
          %v1096 = vsub.s32 %v1093, %v1095
          %v1097 = vrot.slane %v1069, %v1096
          %v1098 = vcombine.high %v1076, %v1076
          %v1099 = vcombine.high %v1083, %v1083
          %v1100 = vcombine.high %v1090, %v1090
          %v1101 = vcombine.high %v1097, %v1097
          %v1102 = vlaneseq
          %v1103 = vshrl.u32 %v1102, 7
          %v1104 = vsub.s32 0, %v1103
          %v1105 = vrot.slane %v1026, %v1104
          %v1106 = vlaneseq
          %v1107 = vshrl.u32 %v1106, 7
          %v1108 = vsub.s32 0, %v1107
          %v1109 = vrot.slane %v1040, %v1108
          %v1110 = vlaneseq
          %v1111 = vshrl.u32 %v1110, 7
          %v1112 = vsub.s32 0, %v1111
          %v1113 = vrot.slane %v1048, %v1112
          %v1114 = vlaneseq
          %v1115 = vshrl.u32 %v1114, 7
          %v1116 = vsub.s32 0, %v1115
          %v1117 = vrot.slane %v1050, %v1116
          %v1118 = vlaneseq
          %v1119 = vshrl.u32 %v1118, 7
          %v1120 = vsub.s32 0, %v1119
          %v1121 = vrot.slane %v1033, %v1120
          %v1122 = vlaneseq
          %v1123 = vshrl.u32 %v1122, 7
          %v1124 = vsub.s32 0, %v1123
          %v1125 = vrot.slane %v1047, %v1124
          %v1126 = vlaneseq
          %v1127 = vshrl.u32 %v1126, 7
          %v1128 = vsub.s32 0, %v1127
          %v1129 = vrot.slane %v1049, %v1128
          %v1130 = vlaneseq
          %v1131 = vshrl.u32 %v1130, 7
          %v1132 = vsub.s32 0, %v1131
          %v1133 = vrot.slane %v1051, %v1132
          %1134 = vset.pattern.permute.xlu0 0
          %1135 = vperm.xlu0 %1134, %v1105
          %v1136 = vpop.permute.xlu0 %1135
          %1137 = vset.pattern.permute.xlu0 0
          %1138 = vperm.xlu0 %1137, %v1109
          %v1139 = vpop.permute.xlu0 %1138
          %1140 = vset.pattern.permute.xlu0 0
          %1141 = vperm.xlu0 %1140, %v1113
          %v1142 = vpop.permute.xlu0 %1141
          %1143 = vset.pattern.permute.xlu0 0
          %1144 = vperm.xlu0 %1143, %v1117
          %v1145 = vpop.permute.xlu0 %1144
          %1146 = vset.pattern.permute.xlu0 0
          %1147 = vperm.xlu0 %1146, %v1121
          %v1148 = vpop.permute.xlu0 %1147
          %1149 = vset.pattern.permute.xlu0 0
          %1150 = vperm.xlu0 %1149, %v1125
          %v1151 = vpop.permute.xlu0 %1150
          %1152 = vset.pattern.permute.xlu0 0
          %1153 = vperm.xlu0 %1152, %v1129
          %v1154 = vpop.permute.xlu0 %1153
          %1155 = vset.pattern.permute.xlu0 0
          %1156 = vperm.xlu0 %1155, %v1133
          %v1157 = vpop.permute.xlu0 %1156
          %vm1158 = vcmp.le.s32.totalorder %v1001, %v1136
          %vm1159 = vcmp.le.s32.totalorder %v1001, %v1139
          %vm1160 = vcmp.le.s32.totalorder %v1001, %v1142
          %vm1161 = vcmp.le.s32.totalorder %v1001, %v1145
          %vm1162 = vcmp.le.s32.totalorder %v1001, %v1148
          %vm1163 = vcmp.le.s32.totalorder %v1001, %v1151
          %vm1164 = vcmp.le.s32.totalorder %v1001, %v1154
          %vm1165 = vcmp.le.s32.totalorder %v1001, %v1157
          %vm1166 = vcmp.gt.s32.totalorder %v1001, %v1136
          %vm1167 = vcmp.gt.s32.totalorder %v1001, %v1139
          %vm1168 = vcmp.gt.s32.totalorder %v1001, %v1142
          %vm1169 = vcmp.gt.s32.totalorder %v1001, %v1145
          %vm1170 = vcmp.gt.s32.totalorder %v1001, %v1148
          %vm1171 = vcmp.gt.s32.totalorder %v1001, %v1151
          %vm1172 = vcmp.gt.s32.totalorder %v1001, %v1154
          %vm1173 = vcmp.gt.s32.totalorder %v1001, %v1157
          %v1174 = vlaneseq
          %v1175 = vshrl.u32 %v1174, 7
          %v1176 = vsub.s32 0, %v1175
          %v1177 = vrot.slane %v1076, %v1176
          %v1178 = vlaneseq
          %v1179 = vshrl.u32 %v1178, 7
          %v1180 = vsub.s32 0, %v1179
          %v1181 = vrot.slane %v1090, %v1180
          %v1182 = vlaneseq
          %v1183 = vshrl.u32 %v1182, 7
          %v1184 = vsub.s32 0, %v1183
          %v1185 = vrot.slane %v1098, %v1184
          %v1186 = vlaneseq
          %v1187 = vshrl.u32 %v1186, 7
          %v1188 = vsub.s32 0, %v1187
          %v1189 = vrot.slane %v1100, %v1188
          %v1190 = vlaneseq
          %v1191 = vshrl.u32 %v1190, 7
          %v1192 = vsub.s32 0, %v1191
          %v1193 = vrot.slane %v1083, %v1192
          %v1194 = vlaneseq
          %v1195 = vshrl.u32 %v1194, 7
          %v1196 = vsub.s32 0, %v1195
          %v1197 = vrot.slane %v1097, %v1196
          %v1198 = vlaneseq
          %v1199 = vshrl.u32 %v1198, 7
          %v1200 = vsub.s32 0, %v1199
          %v1201 = vrot.slane %v1099, %v1200
          %v1202 = vlaneseq
          %v1203 = vshrl.u32 %v1202, 7
          %v1204 = vsub.s32 0, %v1203
          %v1205 = vrot.slane %v1101, %v1204
          %1206 = vset.pattern.permute.xlu0 0
          %1207 = vperm.xlu0 %1206, %v1177
          %v1208 = vpop.permute.xlu0 %1207
          %1209 = vset.pattern.permute.xlu0 0
          %1210 = vperm.xlu0 %1209, %v1181
          %v1211 = vpop.permute.xlu0 %1210
          %1212 = vset.pattern.permute.xlu0 0
          %1213 = vperm.xlu0 %1212, %v1185
          %v1214 = vpop.permute.xlu0 %1213
          %1215 = vset.pattern.permute.xlu0 0
          %1216 = vperm.xlu0 %1215, %v1189
          %v1217 = vpop.permute.xlu0 %1216
          %1218 = vset.pattern.permute.xlu0 0
          %1219 = vperm.xlu0 %1218, %v1193
          %v1220 = vpop.permute.xlu0 %1219
          %1221 = vset.pattern.permute.xlu0 0
          %1222 = vperm.xlu0 %1221, %v1197
          %v1223 = vpop.permute.xlu0 %1222
          %1224 = vset.pattern.permute.xlu0 0
          %1225 = vperm.xlu0 %1224, %v1201
          %v1226 = vpop.permute.xlu0 %1225
          %1227 = vset.pattern.permute.xlu0 0
          %1228 = vperm.xlu0 %1227, %v1205
          %v1229 = vpop.permute.xlu0 %1228
          %vm1230 = vcmp.lt.s32.totalorder %v1001, %v1208
          %vm1231 = vcmp.lt.s32.totalorder %v1001, %v1211
          %vm1232 = vcmp.lt.s32.totalorder %v1001, %v1214
          %vm1233 = vcmp.lt.s32.totalorder %v1001, %v1217
          %vm1234 = vcmp.lt.s32.totalorder %v1001, %v1220
          %vm1235 = vcmp.lt.s32.totalorder %v1001, %v1223
          %vm1236 = vcmp.lt.s32.totalorder %v1001, %v1226
          %vm1237 = vcmp.lt.s32.totalorder %v1001, %v1229
          %vm1238 = vmand %vm1166, %vm1230
          %vm1239 = vmand %vm1167, %vm1231
          %vm1240 = vmand %vm1168, %vm1232
          %vm1241 = vmand %vm1169, %vm1233
          %vm1242 = vmand %vm1170, %vm1234
          %vm1243 = vmand %vm1171, %vm1235
          %vm1244 = vmand %vm1172, %vm1236
          %vm1245 = vmand %vm1173, %vm1237
          %v1246 = vsel %vm1158, %v992, 0.0
          %v1247 = vsel %vm1159, %v993, 0.0
          %v1248 = vsel %vm1160, %v994, 0.0
          %v1249 = vsel %vm1161, %v995, 0.0
          %v1250 = vsel %vm1162, %v996, 0.0
          %v1251 = vsel %vm1163, %v997, 0.0
          %v1252 = vsel %vm1164, %v998, 0.0
          %v1253 = vsel %vm1165, %v999, 0.0
          %v1254 = vrot.slane %v1246, 4
          %v1255 = vmax.f32 %v1246, %v1254
          %v1256 = vrot.slane %v1255, 2
          %v1257 = vmax.f32 %v1255, %v1256
          %v1258 = vrot.slane %v1257, 1
          %v1259 = vmax.f32 %v1257, %v1258
          %v1260 = vrot.slane %v1247, 4
          %v1261 = vmax.f32 %v1247, %v1260
          %v1262 = vrot.slane %v1261, 2
          %v1263 = vmax.f32 %v1261, %v1262
          %v1264 = vrot.slane %v1263, 1
          %v1265 = vmax.f32 %v1263, %v1264
          %v1266 = vrot.slane %v1248, 4
          %v1267 = vmax.f32 %v1248, %v1266
          %v1268 = vrot.slane %v1267, 2
          %v1269 = vmax.f32 %v1267, %v1268
          %v1270 = vrot.slane %v1269, 1
          %v1271 = vmax.f32 %v1269, %v1270
          %v1272 = vrot.slane %v1249, 4
          %v1273 = vmax.f32 %v1249, %v1272
          %v1274 = vrot.slane %v1273, 2
          %v1275 = vmax.f32 %v1273, %v1274
          %v1276 = vrot.slane %v1275, 1
          %v1277 = vmax.f32 %v1275, %v1276
          %v1278 = vrot.slane %v1250, 4
          %v1279 = vmax.f32 %v1250, %v1278
          %v1280 = vrot.slane %v1279, 2
          %v1281 = vmax.f32 %v1279, %v1280
          %v1282 = vrot.slane %v1281, 1
          %v1283 = vmax.f32 %v1281, %v1282
          %v1284 = vrot.slane %v1251, 4
          %v1285 = vmax.f32 %v1251, %v1284
          %v1286 = vrot.slane %v1285, 2
          %v1287 = vmax.f32 %v1285, %v1286
          %v1288 = vrot.slane %v1287, 1
          %v1289 = vmax.f32 %v1287, %v1288
          %v1290 = vrot.slane %v1252, 4
          %v1291 = vmax.f32 %v1252, %v1290
          %v1292 = vrot.slane %v1291, 2
          %v1293 = vmax.f32 %v1291, %v1292
          %v1294 = vrot.slane %v1293, 1
          %v1295 = vmax.f32 %v1293, %v1294
          %v1296 = vrot.slane %v1253, 4
          %v1297 = vmax.f32 %v1253, %v1296
          %v1298 = vrot.slane %v1297, 2
          %v1299 = vmax.f32 %v1297, %v1298
          %v1300 = vrot.slane %v1299, 1
          %v1301 = vmax.f32 %v1299, %v1300
          %vm1310 = vcmask 1041409
          %v1311 = vsel %vm1310, %v1265, %v1259
          %vm1312 = vcmask 1042434
          %v1313 = vsel %vm1312, %v1271, %v1311
          %vm1314 = vcmask 1043459
          %v1315 = vsel %vm1314, %v1277, %v1313
          %vm1316 = vcmask 1044484
          %v1317 = vsel %vm1316, %v1283, %v1315
          %vm1318 = vcmask 1045509
          %v1319 = vsel %vm1318, %v1289, %v1317
          %vm1320 = vcmask 1046534
          %v1321 = vsel %vm1320, %v1295, %v1319
          %vm1322 = vcmask 1047559
          %v1323 = vsel %vm1322, %v1301, %v1321
          %1325 = vst [vmem:[%s313] sm:$0xff] %v1323
          %v1326 = vsel %vm1238, %v992, 0.0
          %v1327 = vsel %vm1239, %v993, 0.0
          %v1328 = vsel %vm1240, %v994, 0.0
          %v1329 = vsel %vm1241, %v995, 0.0
          %v1330 = vsel %vm1242, %v996, 0.0
          %v1331 = vsel %vm1243, %v997, 0.0
          %v1332 = vsel %vm1244, %v998, 0.0
          %v1333 = vsel %vm1245, %v999, 0.0
          %v1334 = vrot.slane %v1326, 4
          %v1335 = vmax.f32 %v1326, %v1334
          %v1336 = vrot.slane %v1335, 2
          %v1337 = vmax.f32 %v1335, %v1336
          %v1338 = vrot.slane %v1337, 1
          %v1339 = vmax.f32 %v1337, %v1338
          %v1340 = vrot.slane %v1327, 4
          %v1341 = vmax.f32 %v1327, %v1340
          %v1342 = vrot.slane %v1341, 2
          %v1343 = vmax.f32 %v1341, %v1342
          %v1344 = vrot.slane %v1343, 1
          %v1345 = vmax.f32 %v1343, %v1344
          %v1346 = vrot.slane %v1328, 4
          %v1347 = vmax.f32 %v1328, %v1346
          %v1348 = vrot.slane %v1347, 2
          %v1349 = vmax.f32 %v1347, %v1348
          %v1350 = vrot.slane %v1349, 1
          %v1351 = vmax.f32 %v1349, %v1350
          %v1352 = vrot.slane %v1329, 4
          %v1353 = vmax.f32 %v1329, %v1352
          %v1354 = vrot.slane %v1353, 2
          %v1355 = vmax.f32 %v1353, %v1354
          %v1356 = vrot.slane %v1355, 1
          %v1357 = vmax.f32 %v1355, %v1356
          %v1358 = vrot.slane %v1330, 4
          %v1359 = vmax.f32 %v1330, %v1358
          %v1360 = vrot.slane %v1359, 2
          %v1361 = vmax.f32 %v1359, %v1360
          %v1362 = vrot.slane %v1361, 1
          %v1363 = vmax.f32 %v1361, %v1362
          %v1364 = vrot.slane %v1331, 4
          %v1365 = vmax.f32 %v1331, %v1364
          %v1366 = vrot.slane %v1365, 2
          %v1367 = vmax.f32 %v1365, %v1366
          %v1368 = vrot.slane %v1367, 1
          %v1369 = vmax.f32 %v1367, %v1368
          %v1370 = vrot.slane %v1332, 4
          %v1371 = vmax.f32 %v1332, %v1370
          %v1372 = vrot.slane %v1371, 2
          %v1373 = vmax.f32 %v1371, %v1372
          %v1374 = vrot.slane %v1373, 1
          %v1375 = vmax.f32 %v1373, %v1374
          %v1376 = vrot.slane %v1333, 4
          %v1377 = vmax.f32 %v1333, %v1376
          %v1378 = vrot.slane %v1377, 2
          %v1379 = vmax.f32 %v1377, %v1378
          %v1380 = vrot.slane %v1379, 1
          %v1381 = vmax.f32 %v1379, %v1380
          %v1390 = vsel %vm1310, %v1345, %v1339
          %v1391 = vsel %vm1312, %v1351, %v1390
          %v1392 = vsel %vm1314, %v1357, %v1391
          %v1393 = vsel %vm1316, %v1363, %v1392
          %v1394 = vsel %vm1318, %v1369, %v1393
          %v1395 = vsel %vm1320, %v1375, %v1394
          %v1396 = vsel %vm1322, %v1381, %v1395
          %1398 = vst [vmem:[%s320] sm:$0xff] %v1396
        $region52: #{tpu_custom_call.1} parent=35 // pred_fallthru
          _
        %s1399 = sand.u32 %s154, 1
        %s1400 = scalar_lea.sflag [#allocation5], %s1399
        %s1401 = sand.u32 %s154, 1
        %s1402 = smul.addr %s1401, 8
        %s1403 = scalar_lea.vmem [#allocation6], %s1402
        %s1404 = sand.u32 %s180, 1
        %s1405 = scalar_lea.sflag [#allocation8], %s1404
        %s1406 = sand.u32 %s180, 1
        %s1407 = smul.addr %s1406, 8
        %s1408 = scalar_lea.vmem [#allocation7], %s1407
        // Predicated region
        $region53: #{tpu_custom_call.1} parent=35 // pred_check
          %p1409 = pneg %p164
        $region54: #{tpu_custom_call.1} parent=35 // pred_check_branch
          %1411 = sbr.rel (%p1409) target = $region56
        $region55: #{tpu_custom_call.1} parent=35 // pred_region
          %s1413 = ssub.s32 128, 128
          %1414 = vsyncadd %s1400, %s1413
          %s1415 = smul.addr %s30, 128
          %s1416 = scalar_lea.hbm %s4, %s1415
          %s1418 = sshll.u32 %s1403, 4
          %s1419 = int_to_ptr.vmem [resolvable:$true] %s1418
          %1421 = dma.vmem_to_hbm [thread:$0]  %s1419, 128, %s1416, %s1400
        $region56: #{tpu_custom_call.1} parent=35 // pred_fallthru
          _
        // Predicated region
        $region57: #{tpu_custom_call.1} parent=35 // pred_check
          %p1422 = pneg %p190
        $region58: #{tpu_custom_call.1} parent=35 // pred_check_branch
          %1424 = sbr.rel (%p1422) target = $region60
        $region59: #{tpu_custom_call.1} parent=35 // pred_region
          %s1426 = ssub.s32 128, 128
          %1427 = vsyncadd %s1405, %s1426
          %s1428 = smul.addr %s30, 128
          %s1429 = scalar_lea.hbm %s5, %s1428
          %s1431 = sshll.u32 %s1408, 4
          %s1432 = int_to_ptr.vmem [resolvable:$true] %s1431
          %1434 = dma.vmem_to_hbm [thread:$0]  %s1432, 128, %s1429, %s1405
        $region60: #{tpu_custom_call.1} parent=35 // pred_fallthru
          _
      $region36: #{tpu_custom_call.1} parent=5 // pred_fallthru
        _
      %p1435 = scmp.le.s32.totalorder 2, %s21
      // Predicated region
      $region61: #{tpu_custom_call.1} parent=5 // pred_check
        %p1436 = pneg %p1435
      $region62: #{tpu_custom_call.1} parent=5 // pred_check_branch
        %1438 = sbr.rel (%p1436) target = $region64
      $region63: #{tpu_custom_call.1} parent=5 // pred_region
        %s1439 = ssub.s32 %s21, 2
        // Predicated region
        $region65: #{tpu_custom_call.1} parent=63 // pred_check
          %p1440 = pneg %p170
        $region66: #{tpu_custom_call.1} parent=63 // pred_check_branch
          %1442 = sbr.rel (%p1440) target = $region68
        $region67: #{tpu_custom_call.1} parent=63 // pred_region
          %s1443 = sand.u32 %s155, 1
          %s1444 = scalar_lea.sflag [#allocation5], %s1443
          %s1445 = sand.u32 %s155, 1
          %s1446 = smul.addr %s1445, 8
          %s1447 = scalar_lea.vmem [#allocation6], %s1446
          %1448 = dma.done %s1444, 128
        $region68: #{tpu_custom_call.1} parent=63 // pred_fallthru
          _
        // Predicated region
        $region69: #{tpu_custom_call.1} parent=63 // pred_check
          %p1449 = pneg %p196
        $region70: #{tpu_custom_call.1} parent=63 // pred_check_branch
          %1451 = sbr.rel (%p1449) target = $region72
        $region71: #{tpu_custom_call.1} parent=63 // pred_region
          %s1452 = sand.u32 %s181, 1
          %s1453 = scalar_lea.sflag [#allocation8], %s1452
          %s1454 = sand.u32 %s181, 1
          %s1455 = smul.addr %s1454, 8
          %s1456 = scalar_lea.vmem [#allocation7], %s1455
          %1457 = dma.done %s1453, 128
        $region72: #{tpu_custom_call.1} parent=63 // pred_fallthru
          _
      $region64: #{tpu_custom_call.1} parent=5 // pred_fallthru
        _
    $region6: #{tpu_custom_call.1} parent=1 // loop_footer
      %s25 = sadd.s32 1, %s21
    $region7: #{tpu_custom_call.1} parent=1 // loop_footer_branch
      %20 = sbr.rel target = $region3
    $region8: #{tpu_custom_call.1} parent=1 // loop_exit
      _
    %1458 = vsyncpa [#allocation4], 1
    %s1459 = scalar_lea.sflag [#allocation4], 1
    %1460 = vsyncpa %s1459, 1
    %1461 = vsyncpa [#allocation5], 1
    %s1462 = scalar_lea.sflag [#allocation5], 1
    %1463 = vsyncpa %s1462, 1
    %1464 = vsyncpa [#allocation8], 1
    %s1465 = scalar_lea.sflag [#allocation8], 1
    %1466 = vsyncpa %s1465, 1

</llo_original>
